<compile_context>
chip_gen: v7x
topology: tpu7x:2x2x1
jax: 0.10.0
libtpu: 0.0.40
codegen_flags: <defaults>
</compile_context>

<pallas_src>
import functools

import jax
import jax.numpy as jnp
from jax.experimental import pallas as pl
from jax.experimental.pallas import tpu as pltpu

_LN_EPS = 1e-12
_TYPE_ROWS = 8                          # nn.Embedding(3, H) padded to 8 rows
_VMEM_TILE_BUDGET = 40 * 1024 * 1024    # per-tile buffer budget for the auto-pick


def _embeddings_kernel(ids_ref,     # (n_tok,) int32   SMEM (scalar prefetch)
                       tok_hbm,     # (vocab, H)       HBM (pl.ANY), manual gather
                       pos_ref,     # (S_pad, H)       VMEM, resident position table
                       typ_ref,     # (_TYPE_ROWS, H)  VMEM, resident type table
                       tt_ref,      # (T, 1) int32     VMEM, token-type ids of tile
                       gamma_ref,   # (1, H)           VMEM, resident
                       beta_ref,    # (1, H)           VMEM, resident
                       out_ref,     # (T, H)           VMEM
                       tok_buf,     # (NBUF, T, H)     VMEM scratch (gather buffers)
                       sems,        # (NBUF,)          DMA semaphores, one per slot
                       *, tiles_per_chunk, tile_tokens, pos_blocks, num_buffers):
    T = tile_tokens
    NBUF = num_buffers
    c = pl.program_id(0)                 # parallel (megacore-shardable) axis
    t = pl.program_id(1)                 # sequential tile axis inside a chunk
    g = c * tiles_per_chunk + t          # global tile index
    slot = t % NBUF

    def start_gather(tile_g, slot_):
        base = tile_g * T

        def row_copy(r, carry):
            row = ids_ref[base + r]      # SMEM scalar read (before any wait)
            pltpu.make_async_copy(tok_hbm.at[row], tok_buf.at[slot_, r],
                                  sems.at[slot_]).start()
            return carry

        jax.lax.fori_loop(0, T, row_copy, 0, unroll=8)

    def wait_gather(slot_):
        # All T row DMAs of this slot signalled sems[slot_]; one aggregate wait
        # over the whole slot buffer (same total byte count) completes them all.
        pltpu.make_async_copy(tok_buf.at[slot_], tok_buf.at[slot_],
                              sems.at[slot_]).wait()

    # Prime the pipeline at the start of each chunk: first NBUF-1 tiles.
    @pl.when(t == 0)
    def _():
        for d in range(NBUF - 1):
            if d < tiles_per_chunk:
                start_gather(g + d, d)

    # Steady state: prefetch the tile NBUF-1 steps ahead; overlaps with the
    # wait + LayerNorm below.
    @pl.when(t + (NBUF - 1) < tiles_per_chunk)
    def _():
        start_gather(g + (NBUF - 1), (t + (NBUF - 1)) % NBUF)

    wait_gather(slot)

    # ---- sum of three embeddings + LayerNorm (f32 accumulation) ----
    tok = tok_buf[slot].astype(jnp.float32)                       # (T, H)

    # Position rows for this tile, sliced from the VMEM-resident table.
    p0 = pl.multiple_of((g % pos_blocks) * T, T)
    pos = pos_ref[pl.ds(p0, T), :].astype(jnp.float32)            # (T, H)

    # Token-type lookup: only 3 live rows -> cheap VPU where-chain (no DMA, no
    # MXU).  Ids >= 3 clamp to row 2, which never occurs for BERT's 0/1/2.
    tt = tt_ref[...]                                              # (T, 1) int32
    typ = typ_ref[...].astype(jnp.float32)                        # (8, H)
    typ_emb = jnp.where(tt == 0, typ[0:1, :],
                        jnp.where(tt == 1, typ[1:2, :], typ[2:3, :]))

    x = tok + pos + typ_emb
    mean = jnp.mean(x, axis=-1, keepdims=True)
    xc = x - mean
    var = jnp.mean(xc * xc, axis=-1, keepdims=True)               # biased == torch
    inv = jax.lax.rsqrt(var + _LN_EPS)
    y = xc * inv * gamma_ref[...].astype(jnp.float32) + beta_ref[...].astype(jnp.float32)
    out_ref[...] = y.astype(out_ref.dtype)
    # TODO(synk): nn.Dropout() is identity in eval mode; training-mode dropout omitted.


def _tile_vmem_bytes(T, H, pos_rows, tok_ib, pos_ib, out_ib, n_buffers):
    return (n_buffers * T * H * tok_ib          # token-row gather buffers
            + 2 * pos_rows * H * pos_ib         # resident position table (x2 safety)
            + 2 * _TYPE_ROWS * H * 4            # token-type table
            + 2 * T * 128 * 4                   # (T,1) int32 block pads to (T,128)
            + 4 * H * 4                         # gamma / beta
            + 2 * T * H * out_ib)               # double-buffered output


def _chip_tuning():
    """Best-effort per-generation tuning: (parallel chunks, gather buffers)."""
    try:
        kind = jax.devices()[0].device_kind.lower().replace(" ", "")
    except Exception:
        return 1, 2
    multi_tc = any(tag in kind for tag in ("v4", "v5p", "v7", "7x"))
    deep = ("v7" in kind) or ("7x" in kind)          # faster HBM -> deeper gather queue
    return (2 if multi_tc else 1), (3 if deep else 2)


@functools.partial(jax.jit,
                   static_argnames=("tile_tokens", "n_chunks", "n_buffers", "out_dtype"))
def _embeddings_pallas(ids_flat, tt_col, tok_table, pos_table, typ_table, gamma, beta,
                       *, tile_tokens, n_chunks, n_buffers, out_dtype):
    n_tok = ids_flat.shape[0]
    hidden = tok_table.shape[1]
    pos_rows = pos_table.shape[0]
    T = tile_tokens
    assert T % 8 == 0 and n_tok % T == 0 and pos_rows % T == 0

    n_tiles = n_tok // T
    pos_blocks = pos_rows // T
    if n_tiles < 2 or n_tiles % n_chunks != 0:
        n_chunks = 1                                   # single-chain fallback
    tiles_per_chunk = n_tiles // n_chunks

    kernel = functools.partial(_embeddings_kernel,
                               tiles_per_chunk=tiles_per_chunk,
                               tile_tokens=T,
                               pos_blocks=pos_blocks,
                               num_buffers=n_buffers)

    def g_of(c, t):
        return c * tiles_per_chunk + t

    grid_spec = pltpu.PrefetchScalarGridSpec(
        num_scalar_prefetch=1,
        grid=(n_chunks, tiles_per_chunk),
        in_specs=[
            # token embedding table stays in HBM; rows gathered manually by DMA
            pl.BlockSpec(memory_space=pl.ANY),
            # position table: whole (S_pad, H) slab, VMEM-resident across steps
            pl.BlockSpec((pos_rows, hidden), lambda c, t, ids: (0, 0)),
            # tiny token-type table, resident
            pl.BlockSpec((_TYPE_ROWS, hidden), lambda c, t, ids: (0, 0)),
            # token-type ids of this tile
            pl.BlockSpec((T, 1), lambda c, t, ids: (g_of(c, t), 0)),
            # layernorm gamma / beta (same block every step -> resident)
            pl.BlockSpec((1, hidden), lambda c, t, ids: (0, 0)),
            pl.BlockSpec((1, hidden), lambda c, t, ids: (0, 0)),
        ],
        out_specs=pl.BlockSpec((T, hidden), lambda c, t, ids: (g_of(c, t), 0)),
        scratch_shapes=[
            pltpu.VMEM((n_buffers, T, hidden), tok_table.dtype),   # gather buffers
            pltpu.SemaphoreType.DMA((n_buffers,)),                 # one sem per slot
        ],
    )

    tok_ib = jnp.dtype(tok_table.dtype).itemsize
    pos_ib = jnp.dtype(pos_table.dtype).itemsize
    out_ib = jnp.dtype(out_dtype).itemsize
    vmem_est = _tile_vmem_bytes(T, hidden, pos_rows, tok_ib, pos_ib, out_ib, n_buffers)
    vmem_limit = int(min(60 * 1024 * 1024,
                         max(16 * 1024 * 1024, vmem_est * 3 // 2 + (2 << 20))))

    cost = pl.CostEstimate(
        flops=10 * n_tok * hidden,
        transcendentals=n_tok,
        bytes_accessed=(n_tok * hidden * tok_ib        # token-row gather
                        + pos_rows * hidden * pos_ib   # positions, read once
                        + 8 * n_tok                    # ids + token-type ids
                        + n_tok * hidden * out_ib),    # writeback
    )

    return pl.pallas_call(
        kernel,
        out_shape=jax.ShapeDtypeStruct((n_tok, hidden), out_dtype),
        grid_spec=grid_spec,
        compiler_params=pltpu.CompilerParams(
            dimension_semantics=("parallel", "arbitrary"),
            vmem_limit_bytes=vmem_limit,
        ),
        cost_estimate=cost,
    )(ids_flat, tok_table, pos_table, typ_table, tt_col, gamma, beta)


def embeddings_forward(input_ids, token_type_ids, params, *,
                       tile_tokens=None, out_dtype=jnp.float32):
    """input_ids, token_type_ids: (B, S) int -> (B, S, H)."""
    B, S = input_ids.shape
    tok_table = params["token_emb"]
    pos_table = params["pos_emb"]
    typ_table = params["type_emb"]
    H = tok_table.shape[1]

    n_chunks, n_buffers = _chip_tuning()
    tok_ib = jnp.dtype(tok_table.dtype).itemsize
    pos_ib = jnp.dtype(pos_table.dtype).itemsize
    out_ib = jnp.dtype(out_dtype).itemsize

    if tile_tokens is None:
        S_pad = ((S + 7) // 8) * 8
        tile_tokens = 8
        for cand in (S_pad, 1024, 512, 256, 128, 64, 32, 16, 8):
            if (cand % 8 == 0 and S_pad % cand == 0 and
                    _tile_vmem_bytes(cand, H, S_pad, tok_ib, pos_ib, out_ib,
                                     n_buffers) <= _VMEM_TILE_BUDGET):
                tile_tokens = cand
                break
    else:
        assert tile_tokens % 8 == 0, "tile_tokens must be a multiple of 8"
        S_pad = ((S + tile_tokens - 1) // tile_tokens) * tile_tokens

    # Pad the sequence to a tile multiple (padded ids / type ids are 0 ->
    # zeroed padding rows of the tables); slice the result back afterwards.
    if S_pad != S:
        pad = ((0, 0), (0, S_pad - S))
        input_ids = jnp.pad(input_ids, pad)
        token_type_ids = jnp.pad(token_type_ids, pad)

    # Position table: exactly S_pad rows, zero-padded beyond max_length.
    if pos_table.shape[0] < S_pad:
        pos_table = jnp.pad(pos_table, ((0, S_pad - pos_table.shape[0]), (0, 0)))
    pos_table = pos_table[:S_pad]

    # Token-type table padded to 8 rows for sublane-friendly residency.
    if typ_table.shape[0] < _TYPE_ROWS:
        typ_table = jnp.pad(typ_table, ((0, _TYPE_ROWS - typ_table.shape[0]), (0, 0)))

    gamma = params["gamma"].reshape(1, H)
    beta = params["beta"].reshape(1, H)

    out_flat = _embeddings_pallas(
        input_ids.reshape(-1).astype(jnp.int32),
        token_type_ids.reshape(-1, 1).astype(jnp.int32),
        tok_table, pos_table, typ_table, gamma, beta,
        tile_tokens=tile_tokens, n_chunks=n_chunks, n_buffers=n_buffers,
        out_dtype=out_dtype)
    return out_flat.reshape(B, S_pad, H)[:, :S, :]


def _reference(input_ids, token_type_ids, params):
    S = input_ids.shape[1]
    x = (params["token_emb"][input_ids]
         + params["pos_emb"][jnp.arange(S)][None, :, :]
         + params["type_emb"][token_type_ids])
    mean = jnp.mean(x, axis=-1, keepdims=True)
    var = jnp.mean((x - mean) ** 2, axis=-1, keepdims=True)
    y = (x - mean) * jax.lax.rsqrt(var + _LN_EPS)
    return y * params["gamma"] + params["beta"]


def init_params(key, vocab_size=30522, hidden_size=768, max_length=128):
    k1, k2, k3 = jax.random.split(key, 3)
    tok = 0.02 * jax.random.normal(k1, (vocab_size, hidden_size), jnp.float32)
    pos = 0.02 * jax.random.normal(k2, (max_length, hidden_size), jnp.float32)
    typ = 0.02 * jax.random.normal(k3, (3, hidden_size), jnp.float32)
    # padding_idx=0 -> row 0 zeroed, matching nn.Embedding(padding_idx=0).
    tok = tok.at[0].set(0.0)
    pos = pos.at[0].set(0.0)
    typ = typ.at[0].set(0.0)
    gamma = jnp.ones((hidden_size,), jnp.float32)
    beta = jnp.zeros((hidden_size,), jnp.float32)
    return {"token_emb": tok, "pos_emb": pos, "type_emb": typ,
            "gamma": gamma, "beta": beta}


if __name__ == "__main__":
    # Small, tiling-friendly shapes: 2 sequences of 16 tokens, hidden 128,
    # tile of 8 tokens -> 4 tiles (exercises the multi-buffer gather chain and,
    # on multi-TC chips, the parallel chunk axis).
    VOCAB, HIDDEN, MAX_LEN = 64, 128, 32
    B, S = 2, 16

    key = jax.random.PRNGKey(0)
    kp, ki, kt = jax.random.split(key, 3)
    params = init_params(kp, VOCAB, HIDDEN, MAX_LEN)

    input_ids = jax.random.randint(ki, (B, S), 0, VOCAB, dtype=jnp.int32)
    token_type_ids = jax.random.randint(kt, (B, S), 0, 3, dtype=jnp.int32)

    out = embeddings_forward(input_ids, token_type_ids, params, tile_tokens=8)
    out = jax.block_until_ready(out)

    ref = _reference(input_ids, token_type_ids, params)
    assert out.shape == (B, S, HIDDEN)
    assert jnp.allclose(out, ref, atol=2e-5, rtol=2e-5), "mismatch vs reference"

    print("KERNEL_OK")
</pallas_src>

<mosaic_0001>
module attributes {stable_mosaic.version = 11 : i64} {
  func.func @_embeddings_kernel(%arg0: i32, %arg1: i32, %arg2: memref<32xi32, #tpu.memory_space<smem>>, %arg3: memref<64x128xf32, #tpu.memory_space<any>>, %arg4: memref<16x128xf32, #tpu.memory_space<vmem>>, %arg5: memref<8x128xf32, #tpu.memory_space<vmem>>, %arg6: memref<8x1xi32, #tpu.memory_space<vmem>>, %arg7: memref<1x128xf32, #tpu.memory_space<vmem>>, %arg8: memref<1x128xf32, #tpu.memory_space<vmem>>, %arg9: memref<8x128xf32, #tpu.memory_space<vmem>>, %arg10: memref<2x8x128xf32, #tpu.memory_space<vmem>>, %arg11: memref<2x!tpu.dma_semaphore, #tpu.memory_space<semaphore_mem>>) attributes {dimension_semantics = [#tpu.dimension_semantics<parallel>, #tpu.dimension_semantics<arbitrary>], iteration_bounds = array<i64: 1, 4>, scalar_prefetch = 1 : i64, scratch_operands = 2 : i64, tpu.core_type = #tpu.core_type<tc>, window_params = [{}, {pipeline_mode = #tpu.pipeline_mode<synchronous>, transform_indices = @transform_1, window_bounds = array<i64: 16, 128>}, {pipeline_mode = #tpu.pipeline_mode<synchronous>, transform_indices = @transform_2, window_bounds = array<i64: 8, 128>}, {transform_indices = @transform_3, window_bounds = array<i64: 8, 1>}, {pipeline_mode = #tpu.pipeline_mode<synchronous>, transform_indices = @transform_4, window_bounds = array<i64: 1, 128>}, {pipeline_mode = #tpu.pipeline_mode<synchronous>, transform_indices = @transform_5, window_bounds = array<i64: 1, 128>}, {transform_indices = @transform_6, window_bounds = array<i64: 8, 128>}]} {
    %c4_i32 = arith.constant 4 : i32
    %0 = arith.muli %arg0, %c4_i32 : i32
    %1 = arith.addi %0, %arg1 : i32
    %c2_i32 = arith.constant 2 : i32
    %c0_i32 = arith.constant 0 : i32
    %2 = arith.cmpi eq, %c2_i32, %c0_i32 : i32
    %c1_i32 = arith.constant 1 : i32
    %3 = arith.select %2, %c1_i32, %c2_i32 : i32
    %4 = arith.remsi %arg1, %3 : i32
    %c0_i32_0 = arith.constant 0 : i32
    %5 = arith.cmpi ne, %4, %c0_i32_0 : i32
    %c0_i32_1 = arith.constant 0 : i32
    %6 = arith.cmpi slt, %4, %c0_i32_1 : i32
    %c0_i32_2 = arith.constant 0 : i32
    %7 = arith.cmpi slt, %3, %c0_i32_2 : i32
    %8 = arith.xori %6, %7 : i1
    %9 = arith.andi %8, %5 : i1
    %10 = arith.addi %4, %3 : i32
    %11 = arith.select %9, %10, %4 : i32
    %c0_i32_3 = arith.constant 0 : i32
    %12 = arith.cmpi eq, %arg1, %c0_i32_3 : i32
    %13 = arith.extui %12 : i1 to i32
    %c0_i32_4 = arith.constant 0 : i32
    %14 = arith.cmpi ne, %13, %c0_i32_4 : i32
    scf.if %14 {
      %c0_i32_36 = arith.constant 0 : i32
      %88 = arith.addi %1, %c0_i32_36 : i32
      %c8_i32_37 = arith.constant 8 : i32
      %89 = arith.muli %88, %c8_i32_37 : i32
      %c0_i32_38 = arith.constant 0 : i32
      %90 = arith.addi %89, %c0_i32_38 : i32
      %91 = arith.index_cast %90 : i32 to index
      %92 = memref.load %arg2[%91] : memref<32xi32, #tpu.memory_space<smem>>
      %c0_i32_39 = arith.constant 0 : i32
      %c0_i32_40 = arith.constant 0 : i32
      %c0_i32_41 = arith.constant 0 : i32
      %93 = tpu.memref_slice %arg3[%92, %c0_i32_41] : memref<64x128xf32, #tpu.memory_space<any>> -> memref<1x128xf32, #tpu.memory_space<any>>
      %94 = tpu.memref_squeeze %93 : memref<1x128xf32, #tpu.memory_space<any>> -> memref<128xf32, #tpu.memory_space<any>>
      %c0_i32_42 = arith.constant 0 : i32
      %95 = tpu.memref_slice %arg10[%c0_i32_39, %c0_i32_38, %c0_i32_42] : memref<2x8x128xf32, #tpu.memory_space<vmem>> -> memref<1x1x128xf32, #tpu.memory_space<vmem>>
      %96 = tpu.memref_squeeze %95 : memref<1x1x128xf32, #tpu.memory_space<vmem>> -> memref<128xf32, #tpu.memory_space<vmem>>
      %97 = tpu.memref_slice %arg11[%c0_i32_40] : memref<2x!tpu.dma_semaphore, #tpu.memory_space<semaphore_mem>> -> memref<1x!tpu.dma_semaphore, #tpu.memory_space<semaphore_mem>>
      %98 = tpu.memref_squeeze %97 : memref<1x!tpu.dma_semaphore, #tpu.memory_space<semaphore_mem>> -> memref<!tpu.dma_semaphore, #tpu.memory_space<semaphore_mem>>
      tpu.enqueue_dma source(%94 : memref<128xf32, #tpu.memory_space<any>>) target(%96 : memref<128xf32, #tpu.memory_space<vmem>>) target_semaphore(%98 : memref<!tpu.dma_semaphore, #tpu.memory_space<semaphore_mem>>)
      %c1_i32_43 = arith.constant 1 : i32
      %99 = arith.addi %89, %c1_i32_43 : i32
      %100 = arith.index_cast %99 : i32 to index
      %101 = memref.load %arg2[%100] : memref<32xi32, #tpu.memory_space<smem>>
      %c0_i32_44 = arith.constant 0 : i32
      %c0_i32_45 = arith.constant 0 : i32
      %c0_i32_46 = arith.constant 0 : i32
      %102 = tpu.memref_slice %arg3[%101, %c0_i32_46] : memref<64x128xf32, #tpu.memory_space<any>> -> memref<1x128xf32, #tpu.memory_space<any>>
      %103 = tpu.memref_squeeze %102 : memref<1x128xf32, #tpu.memory_space<any>> -> memref<128xf32, #tpu.memory_space<any>>
      %c0_i32_47 = arith.constant 0 : i32
      %104 = tpu.memref_slice %arg10[%c0_i32_44, %c1_i32_43, %c0_i32_47] : memref<2x8x128xf32, #tpu.memory_space<vmem>> -> memref<1x1x128xf32, #tpu.memory_space<vmem>>
      %105 = tpu.memref_squeeze %104 : memref<1x1x128xf32, #tpu.memory_space<vmem>> -> memref<128xf32, #tpu.memory_space<vmem>>
      %106 = tpu.memref_slice %arg11[%c0_i32_45] : memref<2x!tpu.dma_semaphore, #tpu.memory_space<semaphore_mem>> -> memref<1x!tpu.dma_semaphore, #tpu.memory_space<semaphore_mem>>
      %107 = tpu.memref_squeeze %106 : memref<1x!tpu.dma_semaphore, #tpu.memory_space<semaphore_mem>> -> memref<!tpu.dma_semaphore, #tpu.memory_space<semaphore_mem>>
      tpu.enqueue_dma source(%103 : memref<128xf32, #tpu.memory_space<any>>) target(%105 : memref<128xf32, #tpu.memory_space<vmem>>) target_semaphore(%107 : memref<!tpu.dma_semaphore, #tpu.memory_space<semaphore_mem>>)
      %c2_i32_48 = arith.constant 2 : i32
      %108 = arith.addi %89, %c2_i32_48 : i32
      %109 = arith.index_cast %108 : i32 to index
      %110 = memref.load %arg2[%109] : memref<32xi32, #tpu.memory_space<smem>>
      %c0_i32_49 = arith.constant 0 : i32
      %c0_i32_50 = arith.constant 0 : i32
      %c0_i32_51 = arith.constant 0 : i32
      %111 = tpu.memref_slice %arg3[%110, %c0_i32_51] : memref<64x128xf32, #tpu.memory_space<any>> -> memref<1x128xf32, #tpu.memory_space<any>>
      %112 = tpu.memref_squeeze %111 : memref<1x128xf32, #tpu.memory_space<any>> -> memref<128xf32, #tpu.memory_space<any>>
      %c0_i32_52 = arith.constant 0 : i32
      %113 = tpu.memref_slice %arg10[%c0_i32_49, %c2_i32_48, %c0_i32_52] : memref<2x8x128xf32, #tpu.memory_space<vmem>> -> memref<1x1x128xf32, #tpu.memory_space<vmem>>
      %114 = tpu.memref_squeeze %113 : memref<1x1x128xf32, #tpu.memory_space<vmem>> -> memref<128xf32, #tpu.memory_space<vmem>>
      %115 = tpu.memref_slice %arg11[%c0_i32_50] : memref<2x!tpu.dma_semaphore, #tpu.memory_space<semaphore_mem>> -> memref<1x!tpu.dma_semaphore, #tpu.memory_space<semaphore_mem>>
      %116 = tpu.memref_squeeze %115 : memref<1x!tpu.dma_semaphore, #tpu.memory_space<semaphore_mem>> -> memref<!tpu.dma_semaphore, #tpu.memory_space<semaphore_mem>>
      tpu.enqueue_dma source(%112 : memref<128xf32, #tpu.memory_space<any>>) target(%114 : memref<128xf32, #tpu.memory_space<vmem>>) target_semaphore(%116 : memref<!tpu.dma_semaphore, #tpu.memory_space<semaphore_mem>>)
      %c3_i32 = arith.constant 3 : i32
      %117 = arith.addi %89, %c3_i32 : i32
      %118 = arith.index_cast %117 : i32 to index
      %119 = memref.load %arg2[%118] : memref<32xi32, #tpu.memory_space<smem>>
      %c0_i32_53 = arith.constant 0 : i32
      %c0_i32_54 = arith.constant 0 : i32
      %c0_i32_55 = arith.constant 0 : i32
      %120 = tpu.memref_slice %arg3[%119, %c0_i32_55] : memref<64x128xf32, #tpu.memory_space<any>> -> memref<1x128xf32, #tpu.memory_space<any>>
      %121 = tpu.memref_squeeze %120 : memref<1x128xf32, #tpu.memory_space<any>> -> memref<128xf32, #tpu.memory_space<any>>
      %c0_i32_56 = arith.constant 0 : i32
      %122 = tpu.memref_slice %arg10[%c0_i32_53, %c3_i32, %c0_i32_56] : memref<2x8x128xf32, #tpu.memory_space<vmem>> -> memref<1x1x128xf32, #tpu.memory_space<vmem>>
      %123 = tpu.memref_squeeze %122 : memref<1x1x128xf32, #tpu.memory_space<vmem>> -> memref<128xf32, #tpu.memory_space<vmem>>
      %124 = tpu.memref_slice %arg11[%c0_i32_54] : memref<2x!tpu.dma_semaphore, #tpu.memory_space<semaphore_mem>> -> memref<1x!tpu.dma_semaphore, #tpu.memory_space<semaphore_mem>>
      %125 = tpu.memref_squeeze %124 : memref<1x!tpu.dma_semaphore, #tpu.memory_space<semaphore_mem>> -> memref<!tpu.dma_semaphore, #tpu.memory_space<semaphore_mem>>
      tpu.enqueue_dma source(%121 : memref<128xf32, #tpu.memory_space<any>>) target(%123 : memref<128xf32, #tpu.memory_space<vmem>>) target_semaphore(%125 : memref<!tpu.dma_semaphore, #tpu.memory_space<semaphore_mem>>)
      %c4_i32_57 = arith.constant 4 : i32
      %126 = arith.addi %89, %c4_i32_57 : i32
      %127 = arith.index_cast %126 : i32 to index
      %128 = memref.load %arg2[%127] : memref<32xi32, #tpu.memory_space<smem>>
      %c0_i32_58 = arith.constant 0 : i32
      %c0_i32_59 = arith.constant 0 : i32
      %c0_i32_60 = arith.constant 0 : i32
      %129 = tpu.memref_slice %arg3[%128, %c0_i32_60] : memref<64x128xf32, #tpu.memory_space<any>> -> memref<1x128xf32, #tpu.memory_space<any>>
      %130 = tpu.memref_squeeze %129 : memref<1x128xf32, #tpu.memory_space<any>> -> memref<128xf32, #tpu.memory_space<any>>
      %c0_i32_61 = arith.constant 0 : i32
      %131 = tpu.memref_slice %arg10[%c0_i32_58, %c4_i32_57, %c0_i32_61] : memref<2x8x128xf32, #tpu.memory_space<vmem>> -> memref<1x1x128xf32, #tpu.memory_space<vmem>>
      %132 = tpu.memref_squeeze %131 : memref<1x1x128xf32, #tpu.memory_space<vmem>> -> memref<128xf32, #tpu.memory_space<vmem>>
      %133 = tpu.memref_slice %arg11[%c0_i32_59] : memref<2x!tpu.dma_semaphore, #tpu.memory_space<semaphore_mem>> -> memref<1x!tpu.dma_semaphore, #tpu.memory_space<semaphore_mem>>
      %134 = tpu.memref_squeeze %133 : memref<1x!tpu.dma_semaphore, #tpu.memory_space<semaphore_mem>> -> memref<!tpu.dma_semaphore, #tpu.memory_space<semaphore_mem>>
      tpu.enqueue_dma source(%130 : memref<128xf32, #tpu.memory_space<any>>) target(%132 : memref<128xf32, #tpu.memory_space<vmem>>) target_semaphore(%134 : memref<!tpu.dma_semaphore, #tpu.memory_space<semaphore_mem>>)
      %c5_i32 = arith.constant 5 : i32
      %135 = arith.addi %89, %c5_i32 : i32
      %136 = arith.index_cast %135 : i32 to index
      %137 = memref.load %arg2[%136] : memref<32xi32, #tpu.memory_space<smem>>
      %c0_i32_62 = arith.constant 0 : i32
      %c0_i32_63 = arith.constant 0 : i32
      %c0_i32_64 = arith.constant 0 : i32
      %138 = tpu.memref_slice %arg3[%137, %c0_i32_64] : memref<64x128xf32, #tpu.memory_space<any>> -> memref<1x128xf32, #tpu.memory_space<any>>
      %139 = tpu.memref_squeeze %138 : memref<1x128xf32, #tpu.memory_space<any>> -> memref<128xf32, #tpu.memory_space<any>>
      %c0_i32_65 = arith.constant 0 : i32
      %140 = tpu.memref_slice %arg10[%c0_i32_62, %c5_i32, %c0_i32_65] : memref<2x8x128xf32, #tpu.memory_space<vmem>> -> memref<1x1x128xf32, #tpu.memory_space<vmem>>
      %141 = tpu.memref_squeeze %140 : memref<1x1x128xf32, #tpu.memory_space<vmem>> -> memref<128xf32, #tpu.memory_space<vmem>>
      %142 = tpu.memref_slice %arg11[%c0_i32_63] : memref<2x!tpu.dma_semaphore, #tpu.memory_space<semaphore_mem>> -> memref<1x!tpu.dma_semaphore, #tpu.memory_space<semaphore_mem>>
      %143 = tpu.memref_squeeze %142 : memref<1x!tpu.dma_semaphore, #tpu.memory_space<semaphore_mem>> -> memref<!tpu.dma_semaphore, #tpu.memory_space<semaphore_mem>>
      tpu.enqueue_dma source(%139 : memref<128xf32, #tpu.memory_space<any>>) target(%141 : memref<128xf32, #tpu.memory_space<vmem>>) target_semaphore(%143 : memref<!tpu.dma_semaphore, #tpu.memory_space<semaphore_mem>>)
      %c6_i32 = arith.constant 6 : i32
      %144 = arith.addi %89, %c6_i32 : i32
      %145 = arith.index_cast %144 : i32 to index
      %146 = memref.load %arg2[%145] : memref<32xi32, #tpu.memory_space<smem>>
      %c0_i32_66 = arith.constant 0 : i32
      %c0_i32_67 = arith.constant 0 : i32
      %c0_i32_68 = arith.constant 0 : i32
      %147 = tpu.memref_slice %arg3[%146, %c0_i32_68] : memref<64x128xf32, #tpu.memory_space<any>> -> memref<1x128xf32, #tpu.memory_space<any>>
      %148 = tpu.memref_squeeze %147 : memref<1x128xf32, #tpu.memory_space<any>> -> memref<128xf32, #tpu.memory_space<any>>
      %c0_i32_69 = arith.constant 0 : i32
      %149 = tpu.memref_slice %arg10[%c0_i32_66, %c6_i32, %c0_i32_69] : memref<2x8x128xf32, #tpu.memory_space<vmem>> -> memref<1x1x128xf32, #tpu.memory_space<vmem>>
      %150 = tpu.memref_squeeze %149 : memref<1x1x128xf32, #tpu.memory_space<vmem>> -> memref<128xf32, #tpu.memory_space<vmem>>
      %151 = tpu.memref_slice %arg11[%c0_i32_67] : memref<2x!tpu.dma_semaphore, #tpu.memory_space<semaphore_mem>> -> memref<1x!tpu.dma_semaphore, #tpu.memory_space<semaphore_mem>>
      %152 = tpu.memref_squeeze %151 : memref<1x!tpu.dma_semaphore, #tpu.memory_space<semaphore_mem>> -> memref<!tpu.dma_semaphore, #tpu.memory_space<semaphore_mem>>
      tpu.enqueue_dma source(%148 : memref<128xf32, #tpu.memory_space<any>>) target(%150 : memref<128xf32, #tpu.memory_space<vmem>>) target_semaphore(%152 : memref<!tpu.dma_semaphore, #tpu.memory_space<semaphore_mem>>)
      %c7_i32 = arith.constant 7 : i32
      %153 = arith.addi %89, %c7_i32 : i32
      %154 = arith.index_cast %153 : i32 to index
      %155 = memref.load %arg2[%154] : memref<32xi32, #tpu.memory_space<smem>>
      %c0_i32_70 = arith.constant 0 : i32
      %c0_i32_71 = arith.constant 0 : i32
      %c0_i32_72 = arith.constant 0 : i32
      %156 = tpu.memref_slice %arg3[%155, %c0_i32_72] : memref<64x128xf32, #tpu.memory_space<any>> -> memref<1x128xf32, #tpu.memory_space<any>>
      %157 = tpu.memref_squeeze %156 : memref<1x128xf32, #tpu.memory_space<any>> -> memref<128xf32, #tpu.memory_space<any>>
      %c0_i32_73 = arith.constant 0 : i32
      %158 = tpu.memref_slice %arg10[%c0_i32_70, %c7_i32, %c0_i32_73] : memref<2x8x128xf32, #tpu.memory_space<vmem>> -> memref<1x1x128xf32, #tpu.memory_space<vmem>>
      %159 = tpu.memref_squeeze %158 : memref<1x1x128xf32, #tpu.memory_space<vmem>> -> memref<128xf32, #tpu.memory_space<vmem>>
      %160 = tpu.memref_slice %arg11[%c0_i32_71] : memref<2x!tpu.dma_semaphore, #tpu.memory_space<semaphore_mem>> -> memref<1x!tpu.dma_semaphore, #tpu.memory_space<semaphore_mem>>
      %161 = tpu.memref_squeeze %160 : memref<1x!tpu.dma_semaphore, #tpu.memory_space<semaphore_mem>> -> memref<!tpu.dma_semaphore, #tpu.memory_space<semaphore_mem>>
      tpu.enqueue_dma source(%157 : memref<128xf32, #tpu.memory_space<any>>) target(%159 : memref<128xf32, #tpu.memory_space<vmem>>) target_semaphore(%161 : memref<!tpu.dma_semaphore, #tpu.memory_space<semaphore_mem>>)
      %c8_i32_74 = arith.constant 8 : i32
    } else {
    }
    %c1_i32_5 = arith.constant 1 : i32
    %15 = arith.addi %arg1, %c1_i32_5 : i32
    %c4_i32_6 = arith.constant 4 : i32
    %16 = arith.cmpi slt, %15, %c4_i32_6 : i32
    %17 = arith.extui %16 : i1 to i32
    %c0_i32_7 = arith.constant 0 : i32
    %18 = arith.cmpi ne, %17, %c0_i32_7 : i32
    scf.if %18 {
      %c1_i32_36 = arith.constant 1 : i32
      %88 = arith.addi %1, %c1_i32_36 : i32
      %c1_i32_37 = arith.constant 1 : i32
      %89 = arith.addi %arg1, %c1_i32_37 : i32
      %c2_i32_38 = arith.constant 2 : i32
      %c0_i32_39 = arith.constant 0 : i32
      %90 = arith.cmpi eq, %c2_i32_38, %c0_i32_39 : i32
      %c1_i32_40 = arith.constant 1 : i32
      %91 = arith.select %90, %c1_i32_40, %c2_i32_38 : i32
      %92 = arith.remsi %89, %91 : i32
      %c0_i32_41 = arith.constant 0 : i32
      %93 = arith.cmpi ne, %92, %c0_i32_41 : i32
      %c0_i32_42 = arith.constant 0 : i32
      %94 = arith.cmpi slt, %92, %c0_i32_42 : i32
      %c0_i32_43 = arith.constant 0 : i32
      %95 = arith.cmpi slt, %91, %c0_i32_43 : i32
      %96 = arith.xori %94, %95 : i1
      %97 = arith.andi %96, %93 : i1
      %98 = arith.addi %92, %91 : i32
      %99 = arith.select %97, %98, %92 : i32
      %c8_i32_44 = arith.constant 8 : i32
      %100 = arith.muli %88, %c8_i32_44 : i32
      %c0_i32_45 = arith.constant 0 : i32
      %101 = arith.addi %100, %c0_i32_45 : i32
      %102 = arith.index_cast %101 : i32 to index
      %103 = memref.load %arg2[%102] : memref<32xi32, #tpu.memory_space<smem>>
      %c0_i32_46 = arith.constant 0 : i32
      %104 = tpu.memref_slice %arg3[%103, %c0_i32_46] : memref<64x128xf32, #tpu.memory_space<any>> -> memref<1x128xf32, #tpu.memory_space<any>>
      %105 = tpu.memref_squeeze %104 : memref<1x128xf32, #tpu.memory_space<any>> -> memref<128xf32, #tpu.memory_space<any>>
      %c0_i32_47 = arith.constant 0 : i32
      %106 = tpu.memref_slice %arg10[%99, %c0_i32_45, %c0_i32_47] : memref<2x8x128xf32, #tpu.memory_space<vmem>> -> memref<1x1x128xf32, #tpu.memory_space<vmem>>
      %107 = tpu.memref_squeeze %106 : memref<1x1x128xf32, #tpu.memory_space<vmem>> -> memref<128xf32, #tpu.memory_space<vmem>>
      %108 = tpu.memref_slice %arg11[%99] : memref<2x!tpu.dma_semaphore, #tpu.memory_space<semaphore_mem>> -> memref<1x!tpu.dma_semaphore, #tpu.memory_space<semaphore_mem>>
      %109 = tpu.memref_squeeze %108 : memref<1x!tpu.dma_semaphore, #tpu.memory_space<semaphore_mem>> -> memref<!tpu.dma_semaphore, #tpu.memory_space<semaphore_mem>>
      tpu.enqueue_dma source(%105 : memref<128xf32, #tpu.memory_space<any>>) target(%107 : memref<128xf32, #tpu.memory_space<vmem>>) target_semaphore(%109 : memref<!tpu.dma_semaphore, #tpu.memory_space<semaphore_mem>>)
      %c1_i32_48 = arith.constant 1 : i32
      %110 = arith.addi %100, %c1_i32_48 : i32
      %111 = arith.index_cast %110 : i32 to index
      %112 = memref.load %arg2[%111] : memref<32xi32, #tpu.memory_space<smem>>
      %c0_i32_49 = arith.constant 0 : i32
      %113 = tpu.memref_slice %arg3[%112, %c0_i32_49] : memref<64x128xf32, #tpu.memory_space<any>> -> memref<1x128xf32, #tpu.memory_space<any>>
      %114 = tpu.memref_squeeze %113 : memref<1x128xf32, #tpu.memory_space<any>> -> memref<128xf32, #tpu.memory_space<any>>
      %c0_i32_50 = arith.constant 0 : i32
      %115 = tpu.memref_slice %arg10[%99, %c1_i32_48, %c0_i32_50] : memref<2x8x128xf32, #tpu.memory_space<vmem>> -> memref<1x1x128xf32, #tpu.memory_space<vmem>>
      %116 = tpu.memref_squeeze %115 : memref<1x1x128xf32, #tpu.memory_space<vmem>> -> memref<128xf32, #tpu.memory_space<vmem>>
      %117 = tpu.memref_slice %arg11[%99] : memref<2x!tpu.dma_semaphore, #tpu.memory_space<semaphore_mem>> -> memref<1x!tpu.dma_semaphore, #tpu.memory_space<semaphore_mem>>
      %118 = tpu.memref_squeeze %117 : memref<1x!tpu.dma_semaphore, #tpu.memory_space<semaphore_mem>> -> memref<!tpu.dma_semaphore, #tpu.memory_space<semaphore_mem>>
      tpu.enqueue_dma source(%114 : memref<128xf32, #tpu.memory_space<any>>) target(%116 : memref<128xf32, #tpu.memory_space<vmem>>) target_semaphore(%118 : memref<!tpu.dma_semaphore, #tpu.memory_space<semaphore_mem>>)
      %c2_i32_51 = arith.constant 2 : i32
      %119 = arith.addi %100, %c2_i32_51 : i32
      %120 = arith.index_cast %119 : i32 to index
      %121 = memref.load %arg2[%120] : memref<32xi32, #tpu.memory_space<smem>>
      %c0_i32_52 = arith.constant 0 : i32
      %122 = tpu.memref_slice %arg3[%121, %c0_i32_52] : memref<64x128xf32, #tpu.memory_space<any>> -> memref<1x128xf32, #tpu.memory_space<any>>
      %123 = tpu.memref_squeeze %122 : memref<1x128xf32, #tpu.memory_space<any>> -> memref<128xf32, #tpu.memory_space<any>>
      %c0_i32_53 = arith.constant 0 : i32
      %124 = tpu.memref_slice %arg10[%99, %c2_i32_51, %c0_i32_53] : memref<2x8x128xf32, #tpu.memory_space<vmem>> -> memref<1x1x128xf32, #tpu.memory_space<vmem>>
      %125 = tpu.memref_squeeze %124 : memref<1x1x128xf32, #tpu.memory_space<vmem>> -> memref<128xf32, #tpu.memory_space<vmem>>
      %126 = tpu.memref_slice %arg11[%99] : memref<2x!tpu.dma_semaphore, #tpu.memory_space<semaphore_mem>> -> memref<1x!tpu.dma_semaphore, #tpu.memory_space<semaphore_mem>>
      %127 = tpu.memref_squeeze %126 : memref<1x!tpu.dma_semaphore, #tpu.memory_space<semaphore_mem>> -> memref<!tpu.dma_semaphore, #tpu.memory_space<semaphore_mem>>
      tpu.enqueue_dma source(%123 : memref<128xf32, #tpu.memory_space<any>>) target(%125 : memref<128xf32, #tpu.memory_space<vmem>>) target_semaphore(%127 : memref<!tpu.dma_semaphore, #tpu.memory_space<semaphore_mem>>)
      %c3_i32 = arith.constant 3 : i32
      %128 = arith.addi %100, %c3_i32 : i32
      %129 = arith.index_cast %128 : i32 to index
      %130 = memref.load %arg2[%129] : memref<32xi32, #tpu.memory_space<smem>>
      %c0_i32_54 = arith.constant 0 : i32
      %131 = tpu.memref_slice %arg3[%130, %c0_i32_54] : memref<64x128xf32, #tpu.memory_space<any>> -> memref<1x128xf32, #tpu.memory_space<any>>
      %132 = tpu.memref_squeeze %131 : memref<1x128xf32, #tpu.memory_space<any>> -> memref<128xf32, #tpu.memory_space<any>>
      %c0_i32_55 = arith.constant 0 : i32
      %133 = tpu.memref_slice %arg10[%99, %c3_i32, %c0_i32_55] : memref<2x8x128xf32, #tpu.memory_space<vmem>> -> memref<1x1x128xf32, #tpu.memory_space<vmem>>
      %134 = tpu.memref_squeeze %133 : memref<1x1x128xf32, #tpu.memory_space<vmem>> -> memref<128xf32, #tpu.memory_space<vmem>>
      %135 = tpu.memref_slice %arg11[%99] : memref<2x!tpu.dma_semaphore, #tpu.memory_space<semaphore_mem>> -> memref<1x!tpu.dma_semaphore, #tpu.memory_space<semaphore_mem>>
      %136 = tpu.memref_squeeze %135 : memref<1x!tpu.dma_semaphore, #tpu.memory_space<semaphore_mem>> -> memref<!tpu.dma_semaphore, #tpu.memory_space<semaphore_mem>>
      tpu.enqueue_dma source(%132 : memref<128xf32, #tpu.memory_space<any>>) target(%134 : memref<128xf32, #tpu.memory_space<vmem>>) target_semaphore(%136 : memref<!tpu.dma_semaphore, #tpu.memory_space<semaphore_mem>>)
      %c4_i32_56 = arith.constant 4 : i32
      %137 = arith.addi %100, %c4_i32_56 : i32
      %138 = arith.index_cast %137 : i32 to index
      %139 = memref.load %arg2[%138] : memref<32xi32, #tpu.memory_space<smem>>
      %c0_i32_57 = arith.constant 0 : i32
      %140 = tpu.memref_slice %arg3[%139, %c0_i32_57] : memref<64x128xf32, #tpu.memory_space<any>> -> memref<1x128xf32, #tpu.memory_space<any>>
      %141 = tpu.memref_squeeze %140 : memref<1x128xf32, #tpu.memory_space<any>> -> memref<128xf32, #tpu.memory_space<any>>
      %c0_i32_58 = arith.constant 0 : i32
      %142 = tpu.memref_slice %arg10[%99, %c4_i32_56, %c0_i32_58] : memref<2x8x128xf32, #tpu.memory_space<vmem>> -> memref<1x1x128xf32, #tpu.memory_space<vmem>>
      %143 = tpu.memref_squeeze %142 : memref<1x1x128xf32, #tpu.memory_space<vmem>> -> memref<128xf32, #tpu.memory_space<vmem>>
      %144 = tpu.memref_slice %arg11[%99] : memref<2x!tpu.dma_semaphore, #tpu.memory_space<semaphore_mem>> -> memref<1x!tpu.dma_semaphore, #tpu.memory_space<semaphore_mem>>
      %145 = tpu.memref_squeeze %144 : memref<1x!tpu.dma_semaphore, #tpu.memory_space<semaphore_mem>> -> memref<!tpu.dma_semaphore, #tpu.memory_space<semaphore_mem>>
      tpu.enqueue_dma source(%141 : memref<128xf32, #tpu.memory_space<any>>) target(%143 : memref<128xf32, #tpu.memory_space<vmem>>) target_semaphore(%145 : memref<!tpu.dma_semaphore, #tpu.memory_space<semaphore_mem>>)
      %c5_i32 = arith.constant 5 : i32
      %146 = arith.addi %100, %c5_i32 : i32
      %147 = arith.index_cast %146 : i32 to index
      %148 = memref.load %arg2[%147] : memref<32xi32, #tpu.memory_space<smem>>
      %c0_i32_59 = arith.constant 0 : i32
      %149 = tpu.memref_slice %arg3[%148, %c0_i32_59] : memref<64x128xf32, #tpu.memory_space<any>> -> memref<1x128xf32, #tpu.memory_space<any>>
      %150 = tpu.memref_squeeze %149 : memref<1x128xf32, #tpu.memory_space<any>> -> memref<128xf32, #tpu.memory_space<any>>
      %c0_i32_60 = arith.constant 0 : i32
      %151 = tpu.memref_slice %arg10[%99, %c5_i32, %c0_i32_60] : memref<2x8x128xf32, #tpu.memory_space<vmem>> -> memref<1x1x128xf32, #tpu.memory_space<vmem>>
      %152 = tpu.memref_squeeze %151 : memref<1x1x128xf32, #tpu.memory_space<vmem>> -> memref<128xf32, #tpu.memory_space<vmem>>
      %153 = tpu.memref_slice %arg11[%99] : memref<2x!tpu.dma_semaphore, #tpu.memory_space<semaphore_mem>> -> memref<1x!tpu.dma_semaphore, #tpu.memory_space<semaphore_mem>>
      %154 = tpu.memref_squeeze %153 : memref<1x!tpu.dma_semaphore, #tpu.memory_space<semaphore_mem>> -> memref<!tpu.dma_semaphore, #tpu.memory_space<semaphore_mem>>
      tpu.enqueue_dma source(%150 : memref<128xf32, #tpu.memory_space<any>>) target(%152 : memref<128xf32, #tpu.memory_space<vmem>>) target_semaphore(%154 : memref<!tpu.dma_semaphore, #tpu.memory_space<semaphore_mem>>)
      %c6_i32 = arith.constant 6 : i32
      %155 = arith.addi %100, %c6_i32 : i32
      %156 = arith.index_cast %155 : i32 to index
      %157 = memref.load %arg2[%156] : memref<32xi32, #tpu.memory_space<smem>>
      %c0_i32_61 = arith.constant 0 : i32
      %158 = tpu.memref_slice %arg3[%157, %c0_i32_61] : memref<64x128xf32, #tpu.memory_space<any>> -> memref<1x128xf32, #tpu.memory_space<any>>
      %159 = tpu.memref_squeeze %158 : memref<1x128xf32, #tpu.memory_space<any>> -> memref<128xf32, #tpu.memory_space<any>>
      %c0_i32_62 = arith.constant 0 : i32
      %160 = tpu.memref_slice %arg10[%99, %c6_i32, %c0_i32_62] : memref<2x8x128xf32, #tpu.memory_space<vmem>> -> memref<1x1x128xf32, #tpu.memory_space<vmem>>
      %161 = tpu.memref_squeeze %160 : memref<1x1x128xf32, #tpu.memory_space<vmem>> -> memref<128xf32, #tpu.memory_space<vmem>>
      %162 = tpu.memref_slice %arg11[%99] : memref<2x!tpu.dma_semaphore, #tpu.memory_space<semaphore_mem>> -> memref<1x!tpu.dma_semaphore, #tpu.memory_space<semaphore_mem>>
      %163 = tpu.memref_squeeze %162 : memref<1x!tpu.dma_semaphore, #tpu.memory_space<semaphore_mem>> -> memref<!tpu.dma_semaphore, #tpu.memory_space<semaphore_mem>>
      tpu.enqueue_dma source(%159 : memref<128xf32, #tpu.memory_space<any>>) target(%161 : memref<128xf32, #tpu.memory_space<vmem>>) target_semaphore(%163 : memref<!tpu.dma_semaphore, #tpu.memory_space<semaphore_mem>>)
      %c7_i32 = arith.constant 7 : i32
      %164 = arith.addi %100, %c7_i32 : i32
      %165 = arith.index_cast %164 : i32 to index
      %166 = memref.load %arg2[%165] : memref<32xi32, #tpu.memory_space<smem>>
      %c0_i32_63 = arith.constant 0 : i32
      %167 = tpu.memref_slice %arg3[%166, %c0_i32_63] : memref<64x128xf32, #tpu.memory_space<any>> -> memref<1x128xf32, #tpu.memory_space<any>>
      %168 = tpu.memref_squeeze %167 : memref<1x128xf32, #tpu.memory_space<any>> -> memref<128xf32, #tpu.memory_space<any>>
      %c0_i32_64 = arith.constant 0 : i32
      %169 = tpu.memref_slice %arg10[%99, %c7_i32, %c0_i32_64] : memref<2x8x128xf32, #tpu.memory_space<vmem>> -> memref<1x1x128xf32, #tpu.memory_space<vmem>>
      %170 = tpu.memref_squeeze %169 : memref<1x1x128xf32, #tpu.memory_space<vmem>> -> memref<128xf32, #tpu.memory_space<vmem>>
      %171 = tpu.memref_slice %arg11[%99] : memref<2x!tpu.dma_semaphore, #tpu.memory_space<semaphore_mem>> -> memref<1x!tpu.dma_semaphore, #tpu.memory_space<semaphore_mem>>
      %172 = tpu.memref_squeeze %171 : memref<1x!tpu.dma_semaphore, #tpu.memory_space<semaphore_mem>> -> memref<!tpu.dma_semaphore, #tpu.memory_space<semaphore_mem>>
      tpu.enqueue_dma source(%168 : memref<128xf32, #tpu.memory_space<any>>) target(%170 : memref<128xf32, #tpu.memory_space<vmem>>) target_semaphore(%172 : memref<!tpu.dma_semaphore, #tpu.memory_space<semaphore_mem>>)
      %c8_i32_65 = arith.constant 8 : i32
    } else {
    }
    %c0_i32_8 = arith.constant 0 : i32
    %c0_i32_9 = arith.constant 0 : i32
    %19 = tpu.memref_slice %arg10[%11, %c0_i32_8, %c0_i32_9] : memref<2x8x128xf32, #tpu.memory_space<vmem>> -> memref<1x8x128xf32, #tpu.memory_space<vmem>>
    %20 = tpu.memref_squeeze %19 : memref<1x8x128xf32, #tpu.memory_space<vmem>> -> memref<8x128xf32, #tpu.memory_space<vmem>>
    %c0_i32_10 = arith.constant 0 : i32
    %c0_i32_11 = arith.constant 0 : i32
    %21 = tpu.memref_slice %arg10[%11, %c0_i32_10, %c0_i32_11] : memref<2x8x128xf32, #tpu.memory_space<vmem>> -> memref<1x8x128xf32, #tpu.memory_space<vmem>>
    %22 = tpu.memref_squeeze %21 : memref<1x8x128xf32, #tpu.memory_space<vmem>> -> memref<8x128xf32, #tpu.memory_space<vmem>>
    %23 = tpu.memref_slice %arg11[%11] : memref<2x!tpu.dma_semaphore, #tpu.memory_space<semaphore_mem>> -> memref<1x!tpu.dma_semaphore, #tpu.memory_space<semaphore_mem>>
    %24 = tpu.memref_squeeze %23 : memref<1x!tpu.dma_semaphore, #tpu.memory_space<semaphore_mem>> -> memref<!tpu.dma_semaphore, #tpu.memory_space<semaphore_mem>>
    tpu.wait_dma2 semaphore(%24 : memref<!tpu.dma_semaphore, #tpu.memory_space<semaphore_mem>>) src(%20 : memref<8x128xf32, #tpu.memory_space<vmem>>) dst(%22 : memref<8x128xf32, #tpu.memory_space<vmem>>)
    %25 = arith.index_cast %11 : i32 to index
    %c0 = arith.constant 0 : index
    %c0_12 = arith.constant 0 : index
    %26 = vector.load %arg10[%25, %c0, %c0_12] : memref<2x8x128xf32, #tpu.memory_space<vmem>>, vector<1x8x128xf32>
    %27 = vector.shape_cast %26 : vector<1x8x128xf32> to vector<8x128xf32>
    %c2_i32_13 = arith.constant 2 : i32
    %c0_i32_14 = arith.constant 0 : i32
    %28 = arith.cmpi eq, %c2_i32_13, %c0_i32_14 : i32
    %c1_i32_15 = arith.constant 1 : i32
    %29 = arith.select %28, %c1_i32_15, %c2_i32_13 : i32
    %30 = arith.remsi %1, %29 : i32
    %c0_i32_16 = arith.constant 0 : i32
    %31 = arith.cmpi ne, %30, %c0_i32_16 : i32
    %c0_i32_17 = arith.constant 0 : i32
    %32 = arith.cmpi slt, %30, %c0_i32_17 : i32
    %c0_i32_18 = arith.constant 0 : i32
    %33 = arith.cmpi slt, %29, %c0_i32_18 : i32
    %34 = arith.xori %32, %33 : i1
    %35 = arith.andi %34, %31 : i1
    %36 = arith.addi %30, %29 : i32
    %37 = arith.select %35, %36, %30 : i32
    %c8_i32 = arith.constant 8 : i32
    %38 = arith.muli %37, %c8_i32 : i32
    %39 = tpu.assume_multiple %38, 8 : i32
    %40 = arith.index_cast %39 : i32 to index
    %c0_19 = arith.constant 0 : index
    %41 = vector.load %arg4[%40, %c0_19] : memref<16x128xf32, #tpu.memory_space<vmem>>, vector<8x128xf32>
    %c0_20 = arith.constant 0 : index
    %c0_21 = arith.constant 0 : index
    %42 = vector.load %arg6[%c0_20, %c0_21] : memref<8x1xi32, #tpu.memory_space<vmem>>, vector<8x1xi32>
    %c0_22 = arith.constant 0 : index
    %c0_23 = arith.constant 0 : index
    %43 = vector.load %arg5[%c0_22, %c0_23] : memref<8x128xf32, #tpu.memory_space<vmem>>, vector<8x128xf32>
    %c0_i32_24 = arith.constant 0 : i32
    %44 = vector.broadcast %c0_i32_24 : i32 to vector<8x1xi32>
    %45 = arith.cmpi eq, %42, %44 : vector<8x1xi32>
    %46 = vector.extract_strided_slice %43 {offsets = [0, 0], sizes = [1, 128], strides = [1, 1]} : vector<8x128xf32> to vector<1x128xf32>
    %c1_i32_25 = arith.constant 1 : i32
    %47 = vector.broadcast %c1_i32_25 : i32 to vector<8x1xi32>
    %48 = arith.cmpi eq, %42, %47 : vector<8x1xi32>
    %49 = vector.extract_strided_slice %43 {offsets = [1, 0], sizes = [1, 128], strides = [1, 1]} : vector<8x128xf32> to vector<1x128xf32>
    %50 = vector.extract_strided_slice %43 {offsets = [2, 0], sizes = [1, 128], strides = [1, 1]} : vector<8x128xf32> to vector<1x128xf32>
    %51 = vector.shape_cast %48 : vector<8x1xi1> to vector<8x1xi1>
    %52 = vector.broadcast %51 : vector<8x1xi1> to vector<8x128xi1>
    %53 = vector.shape_cast %49 : vector<1x128xf32> to vector<1x128xf32>
    %54 = vector.broadcast %53 : vector<1x128xf32> to vector<8x128xf32>
    %55 = vector.shape_cast %50 : vector<1x128xf32> to vector<1x128xf32>
    %56 = vector.broadcast %55 : vector<1x128xf32> to vector<8x128xf32>
    %57 = arith.select %52, %54, %56 : vector<8x128xi1>, vector<8x128xf32>
    %58 = vector.shape_cast %45 : vector<8x1xi1> to vector<8x1xi1>
    %59 = vector.broadcast %58 : vector<8x1xi1> to vector<8x128xi1>
    %60 = vector.shape_cast %46 : vector<1x128xf32> to vector<1x128xf32>
    %61 = vector.broadcast %60 : vector<1x128xf32> to vector<8x128xf32>
    %62 = arith.select %59, %61, %57 : vector<8x128xi1>, vector<8x128xf32>
    %63 = arith.addf %27, %41 : vector<8x128xf32>
    %64 = arith.addf %63, %62 : vector<8x128xf32>
    %cst = arith.constant dense<0.000000e+00> : vector<8xf32>
    %65 = vector.multi_reduction <add>, %64, %cst [1] : vector<8x128xf32> to vector<8xf32>
    %66 = vector.shape_cast %65 : vector<8xf32> to vector<8x1xf32>
    %cst_26 = arith.constant 1.280000e+02 : f32
    %67 = vector.broadcast %cst_26 : f32 to vector<8x1xf32>
    %68 = arith.divf %66, %67 : vector<8x1xf32>
    %69 = vector.broadcast %68 : vector<8x1xf32> to vector<8x128xf32>
    %70 = arith.subf %64, %69 : vector<8x128xf32>
    %71 = arith.mulf %70, %70 : vector<8x128xf32>
    %cst_27 = arith.constant dense<0.000000e+00> : vector<8xf32>
    %72 = vector.multi_reduction <add>, %71, %cst_27 [1] : vector<8x128xf32> to vector<8xf32>
    %73 = vector.shape_cast %72 : vector<8xf32> to vector<8x1xf32>
    %cst_28 = arith.constant 1.280000e+02 : f32
    %74 = vector.broadcast %cst_28 : f32 to vector<8x1xf32>
    %75 = arith.divf %73, %74 : vector<8x1xf32>
    %cst_29 = arith.constant 9.99999996E-13 : f32
    %76 = vector.broadcast %cst_29 : f32 to vector<8x1xf32>
    %77 = arith.addf %75, %76 : vector<8x1xf32>
    %78 = math.rsqrt %77 : vector<8x1xf32>
    %79 = vector.broadcast %78 : vector<8x1xf32> to vector<8x128xf32>
    %80 = arith.mulf %70, %79 : vector<8x128xf32>
    %c0_30 = arith.constant 0 : index
    %c0_31 = arith.constant 0 : index
    %81 = vector.load %arg7[%c0_30, %c0_31] : memref<1x128xf32, #tpu.memory_space<vmem>>, vector<1x128xf32>
    %82 = vector.broadcast %81 : vector<1x128xf32> to vector<8x128xf32>
    %83 = arith.mulf %80, %82 : vector<8x128xf32>
    %c0_32 = arith.constant 0 : index
    %c0_33 = arith.constant 0 : index
    %84 = vector.load %arg8[%c0_32, %c0_33] : memref<1x128xf32, #tpu.memory_space<vmem>>, vector<1x128xf32>
    %85 = vector.broadcast %84 : vector<1x128xf32> to vector<8x128xf32>
    %86 = arith.addf %83, %85 : vector<8x128xf32>
    %c0_34 = arith.constant 0 : index
    %c0_35 = arith.constant 0 : index
    %87 = vector.load %arg9[%c0_34, %c0_35] : memref<8x128xf32, #tpu.memory_space<vmem>>, vector<8x128xf32>
    tpu.vector_store %arg9[%c0_34, %c0_35], %86 {strides = array<i32>} : memref<8x128xf32, #tpu.memory_space<vmem>>, vector<8x128xf32>,
    return
  }
  func.func @transform_1(%arg0: i32, %arg1: i32, %arg2: memref<32xi32, #tpu.memory_space<smem>>) -> (i32, i32) {
    %c0_i32 = arith.constant 0 : i32
    %c0_i32_0 = arith.constant 0 : i32
    %c0_i32_1 = arith.constant 0 : i32
    return %c0_i32, %c0_i32_0 : i32, i32
  }
  func.func @transform_2(%arg0: i32, %arg1: i32, %arg2: memref<32xi32, #tpu.memory_space<smem>>) -> (i32, i32) {
    %c0_i32 = arith.constant 0 : i32
    %c0_i32_0 = arith.constant 0 : i32
    %c0_i32_1 = arith.constant 0 : i32
    return %c0_i32, %c0_i32_0 : i32, i32
  }
  func.func @transform_3(%arg0: i32, %arg1: i32, %arg2: memref<32xi32, #tpu.memory_space<smem>>) -> (i32, i32) {
    %c4_i32 = arith.constant 4 : i32
    %0 = arith.muli %arg0, %c4_i32 : i32
    %1 = arith.addi %0, %arg1 : i32
    %c0_i32 = arith.constant 0 : i32
    %c0_i32_0 = arith.constant 0 : i32
    return %1, %c0_i32 : i32, i32
  }
  func.func @transform_4(%arg0: i32, %arg1: i32, %arg2: memref<32xi32, #tpu.memory_space<smem>>) -> (i32, i32) {
    %c0_i32 = arith.constant 0 : i32
    %c0_i32_0 = arith.constant 0 : i32
    %c0_i32_1 = arith.constant 0 : i32
    return %c0_i32, %c0_i32_0 : i32, i32
  }
  func.func @transform_5(%arg0: i32, %arg1: i32, %arg2: memref<32xi32, #tpu.memory_space<smem>>) -> (i32, i32) {
    %c0_i32 = arith.constant 0 : i32
    %c0_i32_0 = arith.constant 0 : i32
    %c0_i32_1 = arith.constant 0 : i32
    return %c0_i32, %c0_i32_0 : i32, i32
  }
  func.func @transform_6(%arg0: i32, %arg1: i32, %arg2: memref<32xi32, #tpu.memory_space<smem>>) -> (i32, i32) {
    %c4_i32 = arith.constant 4 : i32
    %0 = arith.muli %arg0, %c4_i32 : i32
    %1 = arith.addi %0, %arg1 : i32
    %c0_i32 = arith.constant 0 : i32
    %c0_i32_0 = arith.constant 0 : i32
    return %1, %c0_i32 : i32, i32
  }
}

</mosaic_0001>

<llo_original>
// kernel: _embeddings_pallas.1
$region0: #{_embeddings_pallas.1}
  #allocation0 [shape = 'u32[]', space=smem, size = 0x4, offset = 0x4, fixed_abs, tag = 'smem constant byte address 0x4 - core index']
  #allocation1 [shape = 'u32[144,128]{1,0:T(1,128)}', space=vmem, size = 0x12000, scoped, tag = 'internal scratch']
  #allocation2 [shape = 'f32[2,8,128]{2,1,0:T(8,128)}', space=vmem, size = 0x2000, scoped, tag = 'scratch operand']
  #allocation3 [shape = 's32[2]{0}', space=sflag, size = 0x8, scoped, tag = 'scratch operand']
  #allocation4 [shape = 's32[1]{0}', space=sflag, size = 0x4, scoped, tag = 'scoped memory for _embeddings_pallas.1']
  #allocation5 [shape = 'u8[512]{0}', space=smem, size = 0x200, scoped, tag = 'prefetched SMEM operand 0']
  #allocation8 [shape = 's32[]', space=sflag, size = 0x4, offset = 0, fixed_abs, tag = 'sflag constant byte address 0x0 - dummy sync flag']
  #allocation9 [shape = 's32[]', space=sflag, size = 0x4, offset = 0, fixed_abs, tag = 'sflag constant byte address 0x0 - dummy sync flag']
  #allocation10 [shape = 'u32[]', space=smem, size = 0x4, offset = 0x44, fixed_abs, tag = 'smem constant byte address 0x44 - assertion arg 0']
  #allocation11 [shape = 'u32[]', space=smem, size = 0x4, offset = 0x48, fixed_abs, tag = 'smem constant byte address 0x48 - assertion arg 1']
  #allocation12 [shape = 's32[]', space=sflag, size = 0x4, offset = 0, fixed_abs, tag = 'sflag constant byte address 0x0 - dummy sync flag']
  #allocation13 [shape = 's32[]', space=sflag, size = 0x4, offset = 0, fixed_abs, tag = 'sflag constant byte address 0x0 - dummy sync flag']
  #allocation14 [shape = 's32[]', space=sflag, size = 0x4, offset = 0, fixed_abs, tag = 'sflag constant byte address 0x0 - dummy sync flag']
  #allocation15 [shape = 's32[]', space=sflag, size = 0x4, offset = 0, fixed_abs, tag = 'sflag constant byte address 0x0 - dummy sync flag']
  #allocation16 [shape = 's32[]', space=sflag, size = 0x4, offset = 0, fixed_abs, tag = 'sflag constant byte address 0x0 - dummy sync flag']
  #allocation17 [shape = 's32[]', space=sflag, size = 0x4, offset = 0, fixed_abs, tag = 'sflag constant byte address 0x0 - dummy sync flag']
  #allocation18 [shape = 's32[]', space=sflag, size = 0x4, offset = 0, fixed_abs, tag = 'sflag constant byte address 0x0 - dummy sync flag']
  #allocation19 [shape = 's32[]', space=sflag, size = 0x4, offset = 0, fixed_abs, tag = 'sflag constant byte address 0x0 - dummy sync flag']
  #allocation20 [shape = 's32[]', space=sflag, size = 0x4, offset = 0, fixed_abs, tag = 'sflag constant byte address 0x0 - dummy sync flag']
  #allocation21 [shape = 's32[]', space=sflag, size = 0x4, offset = 0, fixed_abs, tag = 'sflag constant byte address 0x0 - dummy sync flag']
  #allocation22 [shape = 's32[]', space=sflag, size = 0x4, offset = 0, fixed_abs, tag = 'sflag constant byte address 0x0 - dummy sync flag']
  #allocation23 [shape = 's32[]', space=sflag, size = 0x4, offset = 0, fixed_abs, tag = 'sflag constant byte address 0x0 - dummy sync flag']
  #allocation24 [shape = 's32[]', space=sflag, size = 0x4, offset = 0, fixed_abs, tag = 'sflag constant byte address 0x0 - dummy sync flag']
  #allocation25 [shape = 's32[]', space=sflag, size = 0x4, offset = 0, fixed_abs, tag = 'sflag constant byte address 0x0 - dummy sync flag']
  #allocation26 [shape = 's32[]', space=sflag, size = 0x4, offset = 0, fixed_abs, tag = 'sflag constant byte address 0x0 - dummy sync flag']
  #allocation27 [shape = 's32[]', space=sflag, size = 0x4, offset = 0, fixed_abs, tag = 'sflag constant byte address 0x0 - dummy sync flag']
  #allocation28 [shape = 's32[]', space=sflag, size = 0x4, offset = 0, fixed_abs, tag = 'sflag constant byte address 0x0 - dummy sync flag']
  #allocation29 [shape = 's32[]', space=sflag, size = 0x4, offset = 0, fixed_abs, tag = 'sflag constant byte address 0x0 - dummy sync flag']
  #allocation30 [shape = 's32[]', space=sflag, size = 0x4, offset = 0, fixed_abs, tag = 'sflag constant byte address 0x0 - dummy sync flag']
  #allocation31 [shape = 's32[]', space=sflag, size = 0x4, offset = 0, fixed_abs, tag = 'sflag constant byte address 0x0 - dummy sync flag']
  #allocation32 [shape = 's32[]', space=sflag, size = 0x4, offset = 0, fixed_abs, tag = 'sflag constant byte address 0x0 - dummy sync flag']
  #allocation33 [shape = 's32[]', space=sflag, size = 0x4, offset = 0, fixed_abs, tag = 'sflag constant byte address 0x0 - dummy sync flag']
  #allocation34 [shape = 's32[]', space=sflag, size = 0x4, offset = 0, fixed_abs, tag = 'sflag constant byte address 0x0 - dummy sync flag']
  #allocation35 [shape = 's32[]', space=sflag, size = 0x4, offset = 0, fixed_abs, tag = 'sflag constant byte address 0x0 - dummy sync flag']
  #allocation36 [shape = 's32[]', space=sflag, size = 0x4, offset = 0, fixed_abs, tag = 'sflag constant byte address 0x0 - dummy sync flag']
  #allocation37 [shape = 's32[]', space=sflag, size = 0x4, offset = 0, fixed_abs, tag = 'sflag constant byte address 0x0 - dummy sync flag']
  #allocation38 [shape = 's32[]', space=sflag, size = 0x4, offset = 0, fixed_abs, tag = 'sflag constant byte address 0x0 - dummy sync flag']
  #allocation39 [shape = 's32[]', space=sflag, size = 0x4, offset = 0, fixed_abs, tag = 'sflag constant byte address 0x0 - dummy sync flag']
  #allocation40 [shape = 's32[]', space=sflag, size = 0x4, offset = 0, fixed_abs, tag = 'sflag constant byte address 0x0 - dummy sync flag']
  #allocation41 [shape = 's32[]', space=sflag, size = 0x4, offset = 0, fixed_abs, tag = 'sflag constant byte address 0x0 - dummy sync flag']
  %s0 = inlined_call_operand.vmem [shape: s32[32], index: 0, kind: input, shape index: {}]
  %s1 = inlined_call_operand.hbm [shape: f32[64,128], index: 1, kind: input, shape index: {}]
  %s2 = inlined_call_operand.vmem [shape: f32[16,128], index: 2, kind: input, shape index: {}]
  %s3 = inlined_call_operand.vmem [shape: f32[8,128], index: 3, kind: input, shape index: {}]
  %s4 = inlined_call_operand.vmem [shape: s32[32,1], index: 4, kind: input, shape index: {}]
  %s5 = inlined_call_operand.vmem [shape: f32[1,128], index: 5, kind: input, shape index: {}]
  %s6 = inlined_call_operand.vmem [shape: f32[1,128], index: 6, kind: input, shape index: {}]
  %s7 = inlined_call_operand.hbm [shape: f32[32,128], index: 7, kind: output, shape index: {}]
  %s8 = sld [smem:[#allocation0]]
  $region125: #{_embeddings_pallas.1} parent=0
    _
  %s10 = ssub.s32 1, %s8
  %s11 = scalar_select 0, %s10, %s8
  %s12 = sshll.u32 %s0, 4
  %s13 = int_to_ptr.vmem [resolvable:$true] %s12
  %15 = dma.vmem_to_smem %s13, 16, [#allocation5], [#allocation4]
  %16 = dma.done [#allocation4], 16
  %17 = sfence
  $region1: #{_embeddings_pallas.1} parent=0
    #allocation6 [shape = 'u8[8192]{0}', space=vmem, size = 0x2000, scoped, tag = 'output window, operand 0']
    #allocation7 [shape = 's32[2]{0}', space=sflag, size = 0x8, scoped, tag = 'scoped memory for _embeddings_pallas.1']
    %18 = vsyncpa [#allocation7], 0
    %s19 = scalar_lea.sflag [#allocation7], 1
    %20 = vsyncpa %s19, 0
    loop: start=0, step=1, limit=6
    $region2: #{_embeddings_pallas.1} parent=1 // loop_pre_header
      _
    $region3: #{_embeddings_pallas.1} parent=1 // loop_header
      %s22 = sphi 0, %s26
      %p23 = scmp.ge.s32.totalorder %s22, 6
      %s29 = sphi 0, %s41
      %s30 = sphi 0, %s37
      %s31 = sphi 0, %s29
      %s32 = sphi 0, %s30
      %s33 = sphi 0, %s31
      %s34 = sphi 0, %s32
      %s42 = sphi 0, %s42
      %s44 = sphi 0, %s42
      %s45 = sphi 0, %s44
      %s59 = sphi 0, %s45
      %s63 = sphi 0, %s63
      %s65 = sphi 0, %s63
      %s66 = sphi 0, %s65
      %s80 = sphi 0, %s66
      %s90 = sphi 0, %s92
      %s93 = sphi 0, %s90
      %s94 = sphi 0, %s93
      %s110 = sphi 0, %s94
      %s114 = sphi 0, %s114
      %s116 = sphi 0, %s114
      %s117 = sphi 0, %s116
      %s131 = sphi 0, %s117
      %s135 = sphi 0, %s135
      %s137 = sphi 0, %s135
      %s138 = sphi 0, %s137
      %s152 = sphi 0, %s138
      %s162 = sphi 0, %s164
      %s165 = sphi 0, %s162
      %s166 = sphi 0, %s165
      %s182 = sphi 0, %s166
    $region4: #{_embeddings_pallas.1} parent=1 // loop_header_branch
      %25 = sbr.rel (%p23) target = $region8
    $region5: #{_embeddings_pallas.1} parent=1 // loop_body
      %s27 = ssub.s32 %s22, 1
      %s28 = ssub.s32 %s22, 2
      %s35 = sadd.s32 1, %s30
      %p36 = scmp.ge.s32.totalorder %s35, 4
      %s37 = scalar_select %p36, 0, %s35
      %s38 = sadd.s32 1, %s29
      %s39 = scalar_select %p36, %s38, %s29
      %p40 = scmp.ge.s32.totalorder %s39, 1
      %s41 = scalar_select %p40, 0, %s39
      %s43 = sadd.s32 %s42, 1
      %p46 = scmp.eq.s32.totalorder %s22, 3
      %p47 = scmp.ne.s32.totalorder %s42, %s44
      %p48 = scmp.eq.s32.totalorder %s22, 0
      %p49 = por %p47, %p48
      %p50 = scmp.ne.s32.totalorder %s42, %s44
      %p51 = scmp.eq.s32.totalorder %s27, 3
      %p52 = por %p50, %p51
      %p53 = scmp.ne.s32.totalorder %s44, %s45
      %p54 = scmp.eq.s32.totalorder %s27, 0
      %p55 = por %p53, %p54
      %p56 = scmp.ne.s32.totalorder %s44, %s45
      %p57 = scmp.eq.s32.totalorder %s28, 3
      %p58 = por %p56, %p57
      %p60 = scmp.ne.s32.totalorder %s45, %s59
      %p61 = scmp.eq.s32.totalorder %s28, 0
      %p62 = por %p60, %p61
      %s64 = sadd.s32 %s63, 1
      %p67 = scmp.eq.s32.totalorder %s22, 3
      %p68 = scmp.ne.s32.totalorder %s63, %s65
      %p69 = scmp.eq.s32.totalorder %s22, 0
      %p70 = por %p68, %p69
      %p71 = scmp.ne.s32.totalorder %s63, %s65
      %p72 = scmp.eq.s32.totalorder %s27, 3
      %p73 = por %p71, %p72
      %p74 = scmp.ne.s32.totalorder %s65, %s66
      %p75 = scmp.eq.s32.totalorder %s27, 0
      %p76 = por %p74, %p75
      %p77 = scmp.ne.s32.totalorder %s65, %s66
      %p78 = scmp.eq.s32.totalorder %s28, 3
      %p79 = por %p77, %p78
      %p81 = scmp.ne.s32.totalorder %s66, %s80
      %p82 = scmp.eq.s32.totalorder %s28, 0
      %p83 = por %p81, %p82
      %s84 = smul.u32 %s29, 4
      %s85 = sadd.s32 %s84, %s30
      %s86 = smul.u32 %s41, 4
      %s87 = sadd.s32 %s86, %s37
      %s88 = ssub.s32 %s85, %s87
      %p89 = scmp.eq.s32.totalorder %s88, 0
      %s91 = sadd.s32 %s90, 1
      %s92 = scalar_select %p89, %s90, %s91
      %p95 = pneg %p89
      %p96 = scmp.eq.s32.totalorder %s22, 3
      %p97 = por %p95, %p96
      %p98 = scmp.ne.s32.totalorder %s90, %s93
      %p99 = scmp.eq.s32.totalorder %s22, 0
      %p100 = por %p98, %p99
      %p101 = scmp.ne.s32.totalorder %s90, %s93
      %p102 = scmp.eq.s32.totalorder %s27, 3
      %p103 = por %p101, %p102
      %p104 = scmp.ne.s32.totalorder %s93, %s94
      %p105 = scmp.eq.s32.totalorder %s27, 0
      %p106 = por %p104, %p105
      %p107 = scmp.ne.s32.totalorder %s93, %s94
      %p108 = scmp.eq.s32.totalorder %s28, 3
      %p109 = por %p107, %p108
      %p111 = scmp.ne.s32.totalorder %s94, %s110
      %p112 = scmp.eq.s32.totalorder %s28, 0
      %p113 = por %p111, %p112
      %s115 = sadd.s32 %s114, 1
      %p118 = scmp.eq.s32.totalorder %s22, 3
      %p119 = scmp.ne.s32.totalorder %s114, %s116
      %p120 = scmp.eq.s32.totalorder %s22, 0
      %p121 = por %p119, %p120
      %p122 = scmp.ne.s32.totalorder %s114, %s116
      %p123 = scmp.eq.s32.totalorder %s27, 3
      %p124 = por %p122, %p123
      %p125 = scmp.ne.s32.totalorder %s116, %s117
      %p126 = scmp.eq.s32.totalorder %s27, 0
      %p127 = por %p125, %p126
      %p128 = scmp.ne.s32.totalorder %s116, %s117
      %p129 = scmp.eq.s32.totalorder %s28, 3
      %p130 = por %p128, %p129
      %p132 = scmp.ne.s32.totalorder %s117, %s131
      %p133 = scmp.eq.s32.totalorder %s28, 0
      %p134 = por %p132, %p133
      %s136 = sadd.s32 %s135, 1
      %p139 = scmp.eq.s32.totalorder %s22, 3
      %p140 = scmp.ne.s32.totalorder %s135, %s137
      %p141 = scmp.eq.s32.totalorder %s22, 0
      %p142 = por %p140, %p141
      %p143 = scmp.ne.s32.totalorder %s135, %s137
      %p144 = scmp.eq.s32.totalorder %s27, 3
      %p145 = por %p143, %p144
      %p146 = scmp.ne.s32.totalorder %s137, %s138
      %p147 = scmp.eq.s32.totalorder %s27, 0
      %p148 = por %p146, %p147
      %p149 = scmp.ne.s32.totalorder %s137, %s138
      %p150 = scmp.eq.s32.totalorder %s28, 3
      %p151 = por %p149, %p150
      %p153 = scmp.ne.s32.totalorder %s138, %s152
      %p154 = scmp.eq.s32.totalorder %s28, 0
      %p155 = por %p153, %p154
      %s156 = smul.u32 %s29, 4
      %s157 = sadd.s32 %s156, %s30
      %s158 = smul.u32 %s41, 4
      %s159 = sadd.s32 %s158, %s37
      %s160 = ssub.s32 %s157, %s159
      %p161 = scmp.eq.s32.totalorder %s160, 0
      %s163 = sadd.s32 %s162, 1
      %s164 = scalar_select %p161, %s162, %s163
      %p167 = pneg %p161
      %p168 = scmp.eq.s32.totalorder %s22, 3
      %p169 = por %p167, %p168
      %p170 = scmp.ne.s32.totalorder %s162, %s165
      %p171 = scmp.eq.s32.totalorder %s22, 0
      %p172 = por %p170, %p171
      %p173 = scmp.ne.s32.totalorder %s162, %s165
      %p174 = scmp.eq.s32.totalorder %s27, 3
      %p175 = por %p173, %p174
      %p176 = scmp.ne.s32.totalorder %s165, %s166
      %p177 = scmp.eq.s32.totalorder %s27, 0
      %p178 = por %p176, %p177
      %p179 = scmp.ne.s32.totalorder %s165, %s166
      %p180 = scmp.eq.s32.totalorder %s28, 3
      %p181 = por %p179, %p180
      %p183 = scmp.ne.s32.totalorder %s166, %s182
      %p184 = scmp.eq.s32.totalorder %s28, 0
      %p185 = por %p183, %p184
      %p186 = scmp.le.s32.totalorder 1, %s22
      %p187 = scmp.lt.s32.totalorder %s22, 5
      %p188 = pnand %p186, %p187
      %p189 = pneg %p188
      // Predicated region
      $region9: #{_embeddings_pallas.1} parent=5 // pred_check
        _
      $region10: #{_embeddings_pallas.1} parent=5 // pred_check_branch
        %191 = sbr.rel (%p188) target = $region12
      $region11: #{_embeddings_pallas.1} parent=5 // pred_region
        %s192 = ssub.s32 %s22, 1
        // Predicated region
        $region13: #{_embeddings_pallas.1} parent=11 // pred_check
          %p193 = pneg %p55
        $region14: #{_embeddings_pallas.1} parent=11 // pred_check_branch
          %195 = sbr.rel (%p193) target = $region16
        $region15: #{_embeddings_pallas.1} parent=11 // pred_region
          _
        $region16: #{_embeddings_pallas.1} parent=11 // pred_fallthru
          _
        // Predicated region
        $region17: #{_embeddings_pallas.1} parent=11 // pred_check
          %p196 = pneg %p76
        $region18: #{_embeddings_pallas.1} parent=11 // pred_check_branch
          %198 = sbr.rel (%p196) target = $region20
        $region19: #{_embeddings_pallas.1} parent=11 // pred_region
          _
        $region20: #{_embeddings_pallas.1} parent=11 // pred_fallthru
          _
        // Predicated region
        $region21: #{_embeddings_pallas.1} parent=11 // pred_check
          %p199 = pneg %p127
        $region22: #{_embeddings_pallas.1} parent=11 // pred_check_branch
          %201 = sbr.rel (%p199) target = $region24
        $region23: #{_embeddings_pallas.1} parent=11 // pred_region
          _
        $region24: #{_embeddings_pallas.1} parent=11 // pred_fallthru
          _
        // Predicated region
        $region25: #{_embeddings_pallas.1} parent=11 // pred_check
          %p202 = pneg %p148
        $region26: #{_embeddings_pallas.1} parent=11 // pred_check_branch
          %204 = sbr.rel (%p202) target = $region28
        $region27: #{_embeddings_pallas.1} parent=11 // pred_region
          _
        $region28: #{_embeddings_pallas.1} parent=11 // pred_fallthru
          _
      $region12: #{_embeddings_pallas.1} parent=5 // pred_fallthru
        _
      %p205 = scmp.lt.s32.totalorder %s22, 4
      // Predicated region
      $region29: #{_embeddings_pallas.1} parent=5 // pred_check
        %p206 = pneg %p205
      $region30: #{_embeddings_pallas.1} parent=5 // pred_check_branch
        %208 = sbr.rel (%p206) target = $region32
      $region31: #{_embeddings_pallas.1} parent=5 // pred_region
        // Predicated region
        $region33: #{_embeddings_pallas.1} parent=31 // pred_check
          %p209 = pneg %p100
        $region34: #{_embeddings_pallas.1} parent=31 // pred_check_branch
          %211 = sbr.rel (%p209) target = $region36
        $region35: #{_embeddings_pallas.1} parent=31 // pred_region
          %s212 = smul.u32 %s29, 4
          %s213 = sadd.s32 %s212, %s30
          %p214 = scmp.lt.s32.totalorder %s213, 3
          %s215 = scalar_select %p214, %s213, 3
          %s216 = smul.addr %s215, 8
          %s217 = scalar_lea.vmem %s4, %s216
          %s218 = smul.u32 %s29, 4
          %s219 = sadd.s32 %s218, %s30
        $region36: #{_embeddings_pallas.1} parent=31 // pred_fallthru
          _
      $region32: #{_embeddings_pallas.1} parent=5 // pred_fallthru
        _
      %p220 = scmp.le.s32.totalorder 1, %s22
      %p221 = scmp.lt.s32.totalorder %s22, 5
      %p222 = pnand %p220, %p221
      %p223 = pneg %p222
      // Predicated region
      $region37: #{_embeddings_pallas.1} parent=5 // pred_check
        _
      $region38: #{_embeddings_pallas.1} parent=5 // pred_check_branch
        %225 = sbr.rel (%p222) target = $region40
      $region39: #{_embeddings_pallas.1} parent=5 // pred_region
        %s226 = ssub.s32 %s22, 1
        %p227 = pneg %p55
        %p228 = pneg %p52
        %p229 = pneg %p76
        %p230 = pneg %p73
        %s231 = smul.u32 %s31, 4
        %s232 = sadd.s32 %s231, %s32
        %p233 = scmp.lt.s32.totalorder %s232, 3
        %s234 = scalar_select %p233, %s232, 3
        %s235 = smul.addr %s234, 8
        %s236 = scalar_lea.vmem %s4, %s235
        %p237 = pneg %p106
        %p238 = pneg %p103
        %p239 = pneg %p127
        %p240 = pneg %p124
        %p241 = pneg %p148
        %p242 = pneg %p145
        %p243 = pneg %p178
        %p244 = pneg %p175
        %s245 = sand.u32 %s165, 1
        %s246 = scalar_lea.sflag [#allocation7], %s245
        %s247 = sand.u32 %s165, 1
        %s248 = smul.addr %s247, 8
        %s249 = scalar_lea.vmem [#allocation6], %s248
        %s250 = smul.u32 %s31, 4
        %s251 = sadd.s32 %s250, %s32
        %p252 = scmp.lt.s32.totalorder %s251, 3
        %s253 = scalar_select %p252, %s251, 3
        %s254 = smul.addr %s253, 8
        %s255 = scalar_lea.vmem %s4, %s254
        %s256 = smul.u32 %s31, 4
        %s257 = sadd.s32 %s256, %s32
        %s258 = smul.u32 %s31, 4
        %s259 = sadd.s32 %s258, %s32
        %s260 = smul.u32 %s31, 4
        %s261 = sadd.s32 %s260, %s32
        %p262 = scmp.lt.s32.totalorder %s32, 0
        %s263 = ssub.s32 0, %s32
        %s264 = scalar_select %p262, %s263, %s32
        %s265 = sand.u32 %s264, 1
        %s266 = ssub.s32 0, %s265
        %s267 = scalar_select %p262, %s266, %s265
        %p268 = scmp.ne.s32.totalorder %s267, 0
        %p269 = scmp.lt.s32.totalorder %s267, 0
        %p270 = pnand %p269, %p268
        %p271 = pneg %p270
        %s272 = sadd.s32 %s267, 2
        %s273 = scalar_select %p271, %s272, %s267
        %p274 = scmp.eq.s32.totalorder %s32, 0
        // Predicated region
        $region41: #{_embeddings_pallas.1} parent=39 // pred_check
          %p275 = pneg %p274
        $region42: #{_embeddings_pallas.1} parent=39 // pred_check_branch
          %277 = sbr.rel (%p275) target = $region44
        $region43: #{_embeddings_pallas.1} parent=39 // pred_region
          %s278 = smul.u32 %s261, 8
          %s279 = sld [smem:[#allocation5 + %s278]]
          %s280 = smul.addr %s279, 16
          %s281 = scalar_lea.hbm %s1, %s280
          // Predicated region
          $region45: #{_embeddings_pallas.1} parent=43 // pred_check
            _
          $region46: #{_embeddings_pallas.1} parent=43 // pred_check_branch
            %283 = sbr.rel target = $region48
          $region47: #{_embeddings_pallas.1} parent=43 // pred_region
            %284 = sst [smem:[#allocation10]] [#allocation9]
            %285 = sst [smem:[#allocation11]] [#allocation8]
          $region48: #{_embeddings_pallas.1} parent=43 // pred_fallthru
            _
          %287 = shalt.err (0)
          %s289 = sshll.u32 [#allocation2], 4
          %s290 = int_to_ptr.vmem [resolvable:$true] %s289
          %292 = dma.hbm_to_vmem [thread:$0]  %s281, 16, %s290, [#allocation3]
          %s293 = sadd.s32 %s278, 1
          %s294 = sld [smem:[#allocation5 + %s293]]
          %s295 = smul.addr %s294, 16
          %s296 = scalar_lea.hbm %s1, %s295
          %s297 = scalar_lea.vmem [#allocation2], 1
          // Predicated region
          $region49: #{_embeddings_pallas.1} parent=43 // pred_check
            _
          $region50: #{_embeddings_pallas.1} parent=43 // pred_check_branch
            %299 = sbr.rel target = $region52
          $region51: #{_embeddings_pallas.1} parent=43 // pred_region
            %300 = sst [smem:[#allocation10]] [#allocation13]
            %301 = sst [smem:[#allocation11]] [#allocation12]
          $region52: #{_embeddings_pallas.1} parent=43 // pred_fallthru
            _
          %303 = shalt.err (0)
          %s305 = sshll.u32 %s297, 4
          %s306 = int_to_ptr.vmem [resolvable:$true] %s305
          %308 = dma.hbm_to_vmem [thread:$0]  %s296, 16, %s306, [#allocation3]
          %s309 = sadd.s32 %s278, 2
          %s310 = sld [smem:[#allocation5 + %s309]]
          %s311 = smul.addr %s310, 16
          %s312 = scalar_lea.hbm %s1, %s311
          %s313 = scalar_lea.vmem [#allocation2], 2
          // Predicated region
          $region53: #{_embeddings_pallas.1} parent=43 // pred_check
            _
          $region54: #{_embeddings_pallas.1} parent=43 // pred_check_branch
            %315 = sbr.rel target = $region56
          $region55: #{_embeddings_pallas.1} parent=43 // pred_region
            %316 = sst [smem:[#allocation10]] [#allocation15]
            %317 = sst [smem:[#allocation11]] [#allocation14]
          $region56: #{_embeddings_pallas.1} parent=43 // pred_fallthru
            _
          %319 = shalt.err (0)
          %s321 = sshll.u32 %s313, 4
          %s322 = int_to_ptr.vmem [resolvable:$true] %s321
          %324 = dma.hbm_to_vmem [thread:$0]  %s312, 16, %s322, [#allocation3]
          %s325 = sadd.s32 %s278, 3
          %s326 = sld [smem:[#allocation5 + %s325]]
          %s327 = smul.addr %s326, 16
          %s328 = scalar_lea.hbm %s1, %s327
          %s329 = scalar_lea.vmem [#allocation2], 3
          // Predicated region
          $region57: #{_embeddings_pallas.1} parent=43 // pred_check
            _
          $region58: #{_embeddings_pallas.1} parent=43 // pred_check_branch
            %331 = sbr.rel target = $region60
          $region59: #{_embeddings_pallas.1} parent=43 // pred_region
            %332 = sst [smem:[#allocation10]] [#allocation17]
            %333 = sst [smem:[#allocation11]] [#allocation16]
          $region60: #{_embeddings_pallas.1} parent=43 // pred_fallthru
            _
          %335 = shalt.err (0)
          %s337 = sshll.u32 %s329, 4
          %s338 = int_to_ptr.vmem [resolvable:$true] %s337
          %340 = dma.hbm_to_vmem [thread:$0]  %s328, 16, %s338, [#allocation3]
          %s341 = sadd.s32 %s278, 4
          %s342 = sld [smem:[#allocation5 + %s341]]
          %s343 = smul.addr %s342, 16
          %s344 = scalar_lea.hbm %s1, %s343
          %s345 = scalar_lea.vmem [#allocation2], 4
          // Predicated region
          $region61: #{_embeddings_pallas.1} parent=43 // pred_check
            _
          $region62: #{_embeddings_pallas.1} parent=43 // pred_check_branch
            %347 = sbr.rel target = $region64
          $region63: #{_embeddings_pallas.1} parent=43 // pred_region
            %348 = sst [smem:[#allocation10]] [#allocation19]
            %349 = sst [smem:[#allocation11]] [#allocation18]
          $region64: #{_embeddings_pallas.1} parent=43 // pred_fallthru
            _
          %351 = shalt.err (0)
          %s353 = sshll.u32 %s345, 4
          %s354 = int_to_ptr.vmem [resolvable:$true] %s353
          %356 = dma.hbm_to_vmem [thread:$0]  %s344, 16, %s354, [#allocation3]
          %s357 = sadd.s32 %s278, 5
          %s358 = sld [smem:[#allocation5 + %s357]]
          %s359 = smul.addr %s358, 16
          %s360 = scalar_lea.hbm %s1, %s359
          %s361 = scalar_lea.vmem [#allocation2], 5
          // Predicated region
          $region65: #{_embeddings_pallas.1} parent=43 // pred_check
            _
          $region66: #{_embeddings_pallas.1} parent=43 // pred_check_branch
            %363 = sbr.rel target = $region68
          $region67: #{_embeddings_pallas.1} parent=43 // pred_region
            %364 = sst [smem:[#allocation10]] [#allocation21]
            %365 = sst [smem:[#allocation11]] [#allocation20]
          $region68: #{_embeddings_pallas.1} parent=43 // pred_fallthru
            _
          %367 = shalt.err (0)
          %s369 = sshll.u32 %s361, 4
          %s370 = int_to_ptr.vmem [resolvable:$true] %s369
          %372 = dma.hbm_to_vmem [thread:$0]  %s360, 16, %s370, [#allocation3]
          %s373 = sadd.s32 %s278, 6
          %s374 = sld [smem:[#allocation5 + %s373]]
          %s375 = smul.addr %s374, 16
          %s376 = scalar_lea.hbm %s1, %s375
          %s377 = scalar_lea.vmem [#allocation2], 6
          // Predicated region
          $region69: #{_embeddings_pallas.1} parent=43 // pred_check
            _
          $region70: #{_embeddings_pallas.1} parent=43 // pred_check_branch
            %379 = sbr.rel target = $region72
          $region71: #{_embeddings_pallas.1} parent=43 // pred_region
            %380 = sst [smem:[#allocation10]] [#allocation23]
            %381 = sst [smem:[#allocation11]] [#allocation22]
          $region72: #{_embeddings_pallas.1} parent=43 // pred_fallthru
            _
          %383 = shalt.err (0)
          %s385 = sshll.u32 %s377, 4
          %s386 = int_to_ptr.vmem [resolvable:$true] %s385
          %388 = dma.hbm_to_vmem [thread:$0]  %s376, 16, %s386, [#allocation3]
          %s389 = sadd.s32 %s278, 7
          %s390 = sld [smem:[#allocation5 + %s389]]
          %s391 = smul.addr %s390, 16
          %s392 = scalar_lea.hbm %s1, %s391
          %s393 = scalar_lea.vmem [#allocation2], 7
          // Predicated region
          $region73: #{_embeddings_pallas.1} parent=43 // pred_check
            _
          $region74: #{_embeddings_pallas.1} parent=43 // pred_check_branch
            %395 = sbr.rel target = $region76
          $region75: #{_embeddings_pallas.1} parent=43 // pred_region
            %396 = sst [smem:[#allocation10]] [#allocation25]
            %397 = sst [smem:[#allocation11]] [#allocation24]
          $region76: #{_embeddings_pallas.1} parent=43 // pred_fallthru
            _
          %399 = shalt.err (0)
          %s401 = sshll.u32 %s393, 4
          %s402 = int_to_ptr.vmem [resolvable:$true] %s401
          %404 = dma.hbm_to_vmem [thread:$0]  %s392, 16, %s402, [#allocation3]
        $region44: #{_embeddings_pallas.1} parent=39 // pred_fallthru
          _
        %s405 = sadd.s32 %s32, 1
        %p406 = scmp.lt.s32.totalorder %s405, 4
        // Predicated region
        $region77: #{_embeddings_pallas.1} parent=39 // pred_check
          %p407 = pneg %p406
        $region78: #{_embeddings_pallas.1} parent=39 // pred_check_branch
          %409 = sbr.rel (%p407) target = $region80
        $region79: #{_embeddings_pallas.1} parent=39 // pred_region
          %s410 = sadd.s32 %s261, 1
          %p411 = scmp.lt.s32.totalorder %s405, 0
          %s412 = ssub.s32 0, %s405
          %s413 = scalar_select %p411, %s412, %s405
          %s414 = sand.u32 %s413, 1
          %s415 = ssub.s32 0, %s414
          %s416 = scalar_select %p411, %s415, %s414
          %p417 = scmp.ne.s32.totalorder %s416, 0
          %p418 = scmp.lt.s32.totalorder %s416, 0
          %p419 = pnand %p418, %p417
          %p420 = pneg %p419
          %s421 = sadd.s32 %s416, 2
          %s422 = scalar_select %p420, %s421, %s416
          %s423 = smul.u32 %s410, 8
          %s424 = sld [smem:[#allocation5 + %s423]]
          %s425 = smul.addr %s424, 16
          %s426 = scalar_lea.hbm %s1, %s425
          %s427 = smul.u32 %s422, 8
          %s428 = scalar_lea.vmem [#allocation2], %s427
          %s429 = scalar_lea.sflag [#allocation3], %s422
          // Predicated region
          $region81: #{_embeddings_pallas.1} parent=79 // pred_check
            _
          $region82: #{_embeddings_pallas.1} parent=79 // pred_check_branch
            %431 = sbr.rel target = $region84
          $region83: #{_embeddings_pallas.1} parent=79 // pred_region
            %432 = sst [smem:[#allocation10]] [#allocation27]
            %433 = sst [smem:[#allocation11]] [#allocation26]
          $region84: #{_embeddings_pallas.1} parent=79 // pred_fallthru
            _
          %435 = shalt.err (0)
          %s437 = sshll.u32 %s428, 4
          %s438 = int_to_ptr.vmem [resolvable:$true] %s437
          %440 = dma.hbm_to_vmem [thread:$0]  %s426, 16, %s438, %s429
          %s441 = sadd.s32 %s423, 1
          %s442 = sld [smem:[#allocation5 + %s441]]
          %s443 = smul.addr %s442, 16
          %s444 = scalar_lea.hbm %s1, %s443
          %s445 = sadd.s32 1, %s427
          %s446 = scalar_lea.vmem [#allocation2], %s445
          // Predicated region
          $region85: #{_embeddings_pallas.1} parent=79 // pred_check
            _
          $region86: #{_embeddings_pallas.1} parent=79 // pred_check_branch
            %448 = sbr.rel target = $region88
          $region87: #{_embeddings_pallas.1} parent=79 // pred_region
            %449 = sst [smem:[#allocation10]] [#allocation29]
            %450 = sst [smem:[#allocation11]] [#allocation28]
          $region88: #{_embeddings_pallas.1} parent=79 // pred_fallthru
            _
          %452 = shalt.err (0)
          %s454 = sshll.u32 %s446, 4
          %s455 = int_to_ptr.vmem [resolvable:$true] %s454
          %457 = dma.hbm_to_vmem [thread:$0]  %s444, 16, %s455, %s429
          %s458 = sadd.s32 %s423, 2
          %s459 = sld [smem:[#allocation5 + %s458]]
          %s460 = smul.addr %s459, 16
          %s461 = scalar_lea.hbm %s1, %s460
          %s462 = sadd.s32 2, %s427
          %s463 = scalar_lea.vmem [#allocation2], %s462
          // Predicated region
          $region89: #{_embeddings_pallas.1} parent=79 // pred_check
            _
          $region90: #{_embeddings_pallas.1} parent=79 // pred_check_branch
            %465 = sbr.rel target = $region92
          $region91: #{_embeddings_pallas.1} parent=79 // pred_region
            %466 = sst [smem:[#allocation10]] [#allocation31]
            %467 = sst [smem:[#allocation11]] [#allocation30]
          $region92: #{_embeddings_pallas.1} parent=79 // pred_fallthru
            _
          %469 = shalt.err (0)
          %s471 = sshll.u32 %s463, 4
          %s472 = int_to_ptr.vmem [resolvable:$true] %s471
          %474 = dma.hbm_to_vmem [thread:$0]  %s461, 16, %s472, %s429
          %s475 = sadd.s32 %s423, 3
          %s476 = sld [smem:[#allocation5 + %s475]]
          %s477 = smul.addr %s476, 16
          %s478 = scalar_lea.hbm %s1, %s477
          %s479 = sadd.s32 3, %s427
          %s480 = scalar_lea.vmem [#allocation2], %s479
          // Predicated region
          $region93: #{_embeddings_pallas.1} parent=79 // pred_check
            _
          $region94: #{_embeddings_pallas.1} parent=79 // pred_check_branch
            %482 = sbr.rel target = $region96
          $region95: #{_embeddings_pallas.1} parent=79 // pred_region
            %483 = sst [smem:[#allocation10]] [#allocation33]
            %484 = sst [smem:[#allocation11]] [#allocation32]
          $region96: #{_embeddings_pallas.1} parent=79 // pred_fallthru
            _
          %486 = shalt.err (0)
          %s488 = sshll.u32 %s480, 4
          %s489 = int_to_ptr.vmem [resolvable:$true] %s488
          %491 = dma.hbm_to_vmem [thread:$0]  %s478, 16, %s489, %s429
          %s492 = sadd.s32 %s423, 4
          %s493 = sld [smem:[#allocation5 + %s492]]
          %s494 = smul.addr %s493, 16
          %s495 = scalar_lea.hbm %s1, %s494
          %s496 = sadd.s32 4, %s427
          %s497 = scalar_lea.vmem [#allocation2], %s496
          // Predicated region
          $region97: #{_embeddings_pallas.1} parent=79 // pred_check
            _
          $region98: #{_embeddings_pallas.1} parent=79 // pred_check_branch
            %499 = sbr.rel target = $region100
          $region99: #{_embeddings_pallas.1} parent=79 // pred_region
            %500 = sst [smem:[#allocation10]] [#allocation35]
            %501 = sst [smem:[#allocation11]] [#allocation34]
          $region100: #{_embeddings_pallas.1} parent=79 // pred_fallthru
            _
          %503 = shalt.err (0)
          %s505 = sshll.u32 %s497, 4
          %s506 = int_to_ptr.vmem [resolvable:$true] %s505
          %508 = dma.hbm_to_vmem [thread:$0]  %s495, 16, %s506, %s429
          %s509 = sadd.s32 %s423, 5
          %s510 = sld [smem:[#allocation5 + %s509]]
          %s511 = smul.addr %s510, 16
          %s512 = scalar_lea.hbm %s1, %s511
          %s513 = sadd.s32 5, %s427
          %s514 = scalar_lea.vmem [#allocation2], %s513
          // Predicated region
          $region101: #{_embeddings_pallas.1} parent=79 // pred_check
            _
          $region102: #{_embeddings_pallas.1} parent=79 // pred_check_branch
            %516 = sbr.rel target = $region104
          $region103: #{_embeddings_pallas.1} parent=79 // pred_region
            %517 = sst [smem:[#allocation10]] [#allocation37]
            %518 = sst [smem:[#allocation11]] [#allocation36]
          $region104: #{_embeddings_pallas.1} parent=79 // pred_fallthru
            _
          %520 = shalt.err (0)
          %s522 = sshll.u32 %s514, 4
          %s523 = int_to_ptr.vmem [resolvable:$true] %s522
          %525 = dma.hbm_to_vmem [thread:$0]  %s512, 16, %s523, %s429
          %s526 = sadd.s32 %s423, 6
          %s527 = sld [smem:[#allocation5 + %s526]]
          %s528 = smul.addr %s527, 16
          %s529 = scalar_lea.hbm %s1, %s528
          %s530 = sadd.s32 6, %s427
          %s531 = scalar_lea.vmem [#allocation2], %s530
          // Predicated region
          $region105: #{_embeddings_pallas.1} parent=79 // pred_check
            _
          $region106: #{_embeddings_pallas.1} parent=79 // pred_check_branch
            %533 = sbr.rel target = $region108
          $region107: #{_embeddings_pallas.1} parent=79 // pred_region
            %534 = sst [smem:[#allocation10]] [#allocation39]
            %535 = sst [smem:[#allocation11]] [#allocation38]
          $region108: #{_embeddings_pallas.1} parent=79 // pred_fallthru
            _
          %537 = shalt.err (0)
          %s539 = sshll.u32 %s531, 4
          %s540 = int_to_ptr.vmem [resolvable:$true] %s539
          %542 = dma.hbm_to_vmem [thread:$0]  %s529, 16, %s540, %s429
          %s543 = sadd.s32 %s423, 7
          %s544 = sld [smem:[#allocation5 + %s543]]
          %s545 = smul.addr %s544, 16
          %s546 = scalar_lea.hbm %s1, %s545
          %s547 = sadd.s32 7, %s427
          %s548 = scalar_lea.vmem [#allocation2], %s547
          // Predicated region
          $region109: #{_embeddings_pallas.1} parent=79 // pred_check
            _
          $region110: #{_embeddings_pallas.1} parent=79 // pred_check_branch
            %550 = sbr.rel target = $region112
          $region111: #{_embeddings_pallas.1} parent=79 // pred_region
            %551 = sst [smem:[#allocation10]] [#allocation41]
            %552 = sst [smem:[#allocation11]] [#allocation40]
          $region112: #{_embeddings_pallas.1} parent=79 // pred_fallthru
            _
          %554 = shalt.err (0)
          %s556 = sshll.u32 %s548, 4
          %s557 = int_to_ptr.vmem [resolvable:$true] %s556
          %559 = dma.hbm_to_vmem [thread:$0]  %s546, 16, %s557, %s429
        $region80: #{_embeddings_pallas.1} parent=39 // pred_fallthru
          _
        %s560 = smul.u32 %s273, 8
        %s561 = scalar_lea.vmem [#allocation2], %s560
        %s562 = scalar_lea.sflag [#allocation3], %s273
        %s563 = smul.u32 8, 1
        %s564 = sshll.u32 %s563, 4
        %565 = dma.done %s562, %s564
        %v566 = vld [vmem:[%s561] sm:$0xff]
        %p567 = scmp.lt.s32.totalorder %s261, 0
        %s568 = ssub.s32 0, %s261
        %s569 = scalar_select %p567, %s568, %s261
        %s570 = sand.u32 %s569, 1
        %s571 = ssub.s32 0, %s570
        %s572 = scalar_select %p567, %s571, %s570
        %p573 = scmp.ne.s32.totalorder %s572, 0
        %p574 = scmp.lt.s32.totalorder %s572, 0
        %p575 = pnand %p574, %p573
        %p576 = pneg %p575
        %s577 = sadd.s32 %s572, 2
        %s578 = scalar_select %p576, %s577, %s572
        %s579 = smul.u32 %s578, 8
        %s580 = scalar_lea.vmem %s2, %s579
        %v581 = vld [vmem:[%s580] sm:$0xff]
        %v582 = vld [vmem:[%s255] sm:$0xff]
        %v583 = vld [vmem:[%s3] sm:$0xff]
        %vm584 = vcmp.eq.s32.totalorder %v582, 0
        %vm585 = vcmp.eq.s32.totalorder %v582, 1
        %v586 = vsel %vm585, 1, 0
        %587 = vset.pattern.permute.xlu0 0
        %588 = vperm.xlu0 %587, %v586
        %v589 = vpop.permute.xlu0 %588
        %vm590 = vcmp.eq.s32.totalorder %v589, 1
        %v591 = vlaneseq
        %v592 = vshrl.u32 %v591, 7
        %v593 = vsub.s32 1, %v592
        %v594 = vrot.slane %v583, %v593
        %v595 = vlaneseq
        %v596 = vshrl.u32 %v595, 7
        %v597 = vsub.s32 2, %v596
        %v598 = vrot.slane %v583, %v597
        %v599 = vsel %vm590, %v594, %v598
        %v600 = vsel %vm584, 1, 0
        %601 = vset.pattern.permute.xlu0 0
        %602 = vperm.xlu0 %601, %v600
        %v603 = vpop.permute.xlu0 %602
        %vm604 = vcmp.eq.s32.totalorder %v603, 1
        %v605 = vlaneseq
        %v606 = vshrl.u32 %v605, 7
        %v607 = vsub.s32 0, %v606
        %v608 = vrot.slane %v583, %v607
        %v609 = vsel %vm604, %v608, %v599
        %v610 = vadd.f32 %v566, %v581
        %v611 = vadd.f32 %v610, %v609
        %612 = vadd.xlane.f32.xlu0 %v611
        %v613 = vpop.xlane.xlu0 %612
        %v614 = vrcp.pop 128.0
        %v615 = vmul.f32 %v613, %v614
        %v616 = vsub.f32 %v611, %v615
        %v617 = vmul.f32 %v616, %v616
        %618 = vadd.xlane.f32.xlu0 %v617
        %v619 = vpop.xlane.xlu0 %618
        %v620 = vmul.f32 %v619, %v614
        %v621 = vadd.f32 %v620, 1e-12
        %v622 = vrsqrt.pop %v621
        %v623 = vmul.f32 %v616, %v622
        %v624 = vld [vmem:[%s5] sm:$0x1]
        %v626 = vlaneseq
        %v627 = vshrl.u32 %v626, 7
        %v628 = vsub.s32 0, %v627
        %v629 = vrot.slane %v624, %v628
        %v631 = vmul.f32 %v623, %v629
        %v632 = vld [vmem:[%s6] sm:$0x1]
        %v634 = vlaneseq
        %v635 = vshrl.u32 %v634, 7
        %v636 = vsub.s32 0, %v635
        %v637 = vrot.slane %v632, %v636
        %v639 = vadd.f32 %v631, %v637
        %640 = vst [vmem:[%s249] sm:$0xff] %v639
        %s641 = sand.u32 %s165, 1
        %s642 = scalar_lea.sflag [#allocation7], %s641
        %s643 = sand.u32 %s165, 1
        %s644 = smul.addr %s643, 8
        %s645 = scalar_lea.vmem [#allocation6], %s644
        // Predicated region
        $region113: #{_embeddings_pallas.1} parent=39 // pred_check
          %p646 = pneg %p175
        $region114: #{_embeddings_pallas.1} parent=39 // pred_check_branch
          %648 = sbr.rel (%p646) target = $region116
        $region115: #{_embeddings_pallas.1} parent=39 // pred_region
          %s649 = smul.u32 %s31, 4
          %s650 = sadd.s32 %s649, %s32
          %s652 = ssub.s32 128, 128
          %653 = vsyncadd %s642, %s652
          %s654 = smul.addr %s650, 128
          %s655 = scalar_lea.hbm %s7, %s654
          %s657 = sshll.u32 %s645, 4
          %s658 = int_to_ptr.vmem [resolvable:$true] %s657
          %660 = dma.vmem_to_hbm [thread:$0]  %s658, 128, %s655, %s642
        $region116: #{_embeddings_pallas.1} parent=39 // pred_fallthru
          _
      $region40: #{_embeddings_pallas.1} parent=5 // pred_fallthru
        _
      %p661 = scmp.le.s32.totalorder 2, %s22
      // Predicated region
      $region117: #{_embeddings_pallas.1} parent=5 // pred_check
        %p662 = pneg %p661
      $region118: #{_embeddings_pallas.1} parent=5 // pred_check_branch
        %664 = sbr.rel (%p662) target = $region120
      $region119: #{_embeddings_pallas.1} parent=5 // pred_region
        %s665 = ssub.s32 %s22, 2
        // Predicated region
        $region121: #{_embeddings_pallas.1} parent=119 // pred_check
          %p666 = pneg %p181
        $region122: #{_embeddings_pallas.1} parent=119 // pred_check_branch
          %668 = sbr.rel (%p666) target = $region124
        $region123: #{_embeddings_pallas.1} parent=119 // pred_region
          %s669 = sand.u32 %s166, 1
          %s670 = scalar_lea.sflag [#allocation7], %s669
          %s671 = sand.u32 %s166, 1
          %s672 = smul.addr %s671, 8
          %s673 = scalar_lea.vmem [#allocation6], %s672
          %674 = dma.done %s670, 128
        $region124: #{_embeddings_pallas.1} parent=119 // pred_fallthru
          _
      $region120: #{_embeddings_pallas.1} parent=5 // pred_fallthru
        _
    $region6: #{_embeddings_pallas.1} parent=1 // loop_footer
      %s26 = sadd.s32 1, %s22
    $region7: #{_embeddings_pallas.1} parent=1 // loop_footer_branch
      %21 = sbr.rel target = $region3
    $region8: #{_embeddings_pallas.1} parent=1 // loop_exit
      _
    %675 = vsyncpa [#allocation7], 1
    %s676 = scalar_lea.sflag [#allocation7], 1
    %677 = vsyncpa %s676, 1
  %678 = vsyncmov [#allocation3]
  %s679 = vpop.sfrf %678
  %p680 = scmp.eq.s32.totalorder %s679, 0
  %p681 = pneg %p680
  %683 = shalt.err (%p681)
  %s684 = scalar_lea.sflag [#allocation3], 1
  %685 = vsyncmov %s684
  %s686 = vpop.sfrf %685
  %p687 = scmp.eq.s32.totalorder %s686, 0
  %p688 = pneg %p687
  %690 = shalt.err (%p688)

</llo_original>
